<compile_context>
chip_gen: v7x
topology: tpu7x:2x2x1
jax: 0.10.0
libtpu: 0.0.40
codegen_flags: <defaults>
</compile_context>

<pallas_src>
import functools

import jax
import jax.numpy as jnp
from jax.experimental import pallas as pl
from jax.experimental.pallas import tpu as pltpu


def _silu(v):
    return v * jax.nn.sigmoid(v)


def _round_up(n, m):
    return ((n + m - 1) // m) * m


def _pick_tile(n, max_tm):
    # At least 16 rows (bf16 sublane packing), at most max_tm.
    return min(max_tm, _round_up(max(n, 1), 16))


def _pad_rows(a, rows):
    n = a.shape[0]
    if n == rows:
        return a
    return jnp.pad(a, [(0, rows - n)] + [(0, 0)] * (a.ndim - 1))


def _row_spec(tm, ncols):
    return pl.BlockSpec((tm, ncols), lambda i: (i, 0))


def _resident_spec(shape):
    # Constant index_map -> fetched once, VMEM-resident across the row grid.
    # For large H on v7x (64 MiB VMEM) also pass pipeline_mode=pl.Buffered(1)
    # here to drop the second (useless) buffer for these constant-index inputs.
    ndim = len(shape)
    return pl.BlockSpec(shape, lambda i: (0,) * ndim)


_COMPILER_PARAMS = pltpu.CompilerParams(
    dimension_semantics=("parallel",),
    vmem_limit_bytes=48 * 1024 * 1024,
)


# ---------------------------------------------------------------------------
# Kernel 1: fused edge-wise pre-processing.
# ---------------------------------------------------------------------------
def _edge_kernel(x_ref, pb_ref, wp_ref, wji_ref, bji_ref, wkj_ref, bkj_ref,
                 wdn_ref, xji_ref, dn_ref):
    x = x_ref[...]
    # pair_network_initial: Linear(pair_basis_dim -> H, bias=False) + SiLU
    pb = _silu(jnp.dot(pb_ref[...], wp_ref[...],
                       preferred_element_type=jnp.float32))
    # emb_ji / emb_kj: Linear(H -> H) + SiLU (f32 accumulate + f32 activation)
    x_ji = _silu(jnp.dot(x, wji_ref[...],
                         preferred_element_type=jnp.float32) + bji_ref[...])
    x_kj = _silu(jnp.dot(x, wkj_ref[...],
                         preferred_element_type=jnp.float32) + bkj_ref[...])
    x_kj = x_kj * pb
    # pair_project_down: Linear(H -> int_emb, bias=False) + SiLU
    dn = _silu(jnp.dot(x_kj.astype(wdn_ref.dtype), wdn_ref[...],
                       preferred_element_type=jnp.float32))
    xji_ref[...] = x_ji.astype(xji_ref.dtype)
    dn_ref[...] = dn.astype(dn_ref.dtype)


# ---------------------------------------------------------------------------
# Kernel 2: fused triplet-wise message construction.
# ---------------------------------------------------------------------------
def _triplet_kernel(tb_ref, g_ref, wt_ref, o_ref):
    # triplet_network_initial: Linear(triplet_basis_dim -> int_emb, no bias)+SiLU
    tb = _silu(jnp.dot(tb_ref[...], wt_ref[...],
                       preferred_element_type=jnp.float32))
    # x_kj[idx_kj] * triplet_basis   (gather already applied in the wrapper)
    o_ref[...] = (tb * g_ref[...].astype(jnp.float32)).astype(o_ref.dtype)


# ---------------------------------------------------------------------------
# Kernel 3: fused up-projection + skip + residual stacks.
# ---------------------------------------------------------------------------
def _residual_layer(h, w1, b1, w2, b2, dot_dtype):
    t = _silu(jnp.dot(h.astype(dot_dtype), w1,
                      preferred_element_type=jnp.float32) + b1)
    t = _silu(jnp.dot(t.astype(dot_dtype), w2,
                      preferred_element_type=jnp.float32) + b2)
    return h + t


def _output_kernel(agg_ref, xji_ref, x_ref, wup_ref,
                   bw1_ref, bb1_ref, bw2_ref, bb2_ref,
                   aw1_ref, ab1_ref, aw2_ref, ab2_ref,
                   o_ref, *, n_before, n_after):
    dot_dtype = wup_ref.dtype
    # pair_project_up: Linear(int_emb -> H, bias=False) + SiLU
    up = _silu(jnp.dot(agg_ref[...], wup_ref[...],
                       preferred_element_type=jnp.float32))
    h = xji_ref[...].astype(jnp.float32) + up
    for l in range(n_before):                     # layers_before_skip (unrolled)
        h = _residual_layer(h, bw1_ref[l], bb1_ref[l], bw2_ref[l], bb2_ref[l],
                            dot_dtype)
    h = h + x_ref[...].astype(jnp.float32)        # skip connection
    for l in range(n_after):                      # layers_after_skip (unrolled)
        h = _residual_layer(h, aw1_ref[l], ab1_ref[l], aw2_ref[l], ab2_ref[l],
                            dot_dtype)
    o_ref[...] = h.astype(o_ref.dtype)


# ---------------------------------------------------------------------------
# Wrapper
# ---------------------------------------------------------------------------
@functools.partial(jax.jit, static_argnames=("use_bf16_dots", "max_tm"))
def interaction_block(x, pair_basis, triplet_basis, idx_kj, idx_ji, params,
                      *, use_bf16_dots=False, max_tm=256):
    """Pallas implementation of InteractionBlock.forward.

    x:             (E, H)      edge embeddings
    pair_basis:    (E, P)      raw pair basis
    triplet_basis: (T, TB)     raw triplet basis
    idx_kj/idx_ji: (T,) int32  triplet -> edge indices
    params:        dict of pre-transposed (in, out) weights (see make_params)
    """
    out_dtype = x.dtype
    io_dtype = jnp.bfloat16 if use_bf16_dots else x.dtype

    E, H = x.shape
    P = pair_basis.shape[1]
    T, TB = triplet_basis.shape
    D_int = params["w_down"].shape[1]
    n_before = params["bw1"].shape[0]
    n_after = params["aw1"].shape[0]

    cast = lambda a: a.astype(io_dtype)
    p = {k: cast(v) for k, v in params.items()}

    # ---- edge-row tiling --------------------------------------------------
    tm = _pick_tile(E, max_tm)
    Ep = _round_up(E, tm)
    x_p = _pad_rows(cast(x), Ep)
    pb_p = _pad_rows(cast(pair_basis), Ep)

    x_ji_p, kj_down_p = pl.pallas_call(
        _edge_kernel,
        out_shape=(jax.ShapeDtypeStruct((Ep, H), io_dtype),
                   jax.ShapeDtypeStruct((Ep, D_int), io_dtype)),
        grid_spec=pltpu.PrefetchScalarGridSpec(
            num_scalar_prefetch=0,
            grid=(Ep // tm,),
            in_specs=[
                _row_spec(tm, H),              # x
                _row_spec(tm, P),              # pair_basis
                _resident_spec((P, H)),        # w_pair
                _resident_spec((H, H)),        # w_ji
                _resident_spec((1, H)),        # b_ji
                _resident_spec((H, H)),        # w_kj
                _resident_spec((1, H)),        # b_kj
                _resident_spec((H, D_int)),    # w_down
            ],
            out_specs=(_row_spec(tm, H), _row_spec(tm, D_int)),
        ),
        compiler_params=_COMPILER_PARAMS,
    )(x_p, pb_p, p["w_pair"], p["w_ji"], p["b_ji"], p["w_kj"], p["b_kj"],
      p["w_down"])

    # ---- triplet-row tiling -----------------------------------------------
    # TODO(synk): the data-dependent gather (x_kj[idx_kj]) and scatter_add over
    # idx_ji are left to XLA ops in the wrapper; a Pallas version would need
    # scalar-prefetch row DMA / sorted-segment accumulation.
    gathered = jnp.take(kj_down_p, idx_kj, axis=0)            # (T, D_int)

    tt = _pick_tile(T, max_tm)
    Tp = _round_up(T, tt)
    tb_p = _pad_rows(cast(triplet_basis), Tp)
    g_p = _pad_rows(gathered, Tp)

    msg_p = pl.pallas_call(
        _triplet_kernel,
        out_shape=jax.ShapeDtypeStruct((Tp, D_int), io_dtype),
        grid_spec=pltpu.PrefetchScalarGridSpec(
            num_scalar_prefetch=0,
            grid=(Tp // tt,),
            in_specs=[
                _row_spec(tt, TB),             # triplet_basis
                _row_spec(tt, D_int),          # gathered kj_down
                _resident_spec((TB, D_int)),   # w_trip
            ],
            out_specs=_row_spec(tt, D_int),
        ),
        compiler_params=_COMPILER_PARAMS,
    )(tb_p, g_p, p["w_trip"])

    # scatter_add over idx_ji (f32 accumulation), onto padded edge rows.
    agg = jnp.zeros((Ep, D_int), jnp.float32).at[idx_ji].add(
        msg_p[:T].astype(jnp.float32))
    agg = agg.astype(io_dtype)

    # ---- fused up-projection + residual stacks ------------------------------
    out_kernel = functools.partial(_output_kernel,
                                   n_before=n_before, n_after=n_after)
    h_p = pl.pallas_call(
        out_kernel,
        out_shape=jax.ShapeDtypeStruct((Ep, H), out_dtype),
        grid_spec=pltpu.PrefetchScalarGridSpec(
            num_scalar_prefetch=0,
            grid=(Ep // tm,),
            in_specs=[
                _row_spec(tm, D_int),                  # agg
                _row_spec(tm, H),                      # x_ji
                _row_spec(tm, H),                      # x
                _resident_spec((D_int, H)),            # w_up
                _resident_spec((n_before, H, H)),      # before: w1 stack
                _resident_spec((n_before, 1, H)),      # before: b1 stack
                _resident_spec((n_before, H, H)),      # before: w2 stack
                _resident_spec((n_before, 1, H)),      # before: b2 stack
                _resident_spec((n_after, H, H)),       # after:  w1 stack
                _resident_spec((n_after, 1, H)),       # after:  b1 stack
                _resident_spec((n_after, H, H)),       # after:  w2 stack
                _resident_spec((n_after, 1, H)),       # after:  b2 stack
            ],
            out_specs=_row_spec(tm, H),
        ),
        compiler_params=_COMPILER_PARAMS,
    )(agg, x_ji_p, x_p, p["w_up"],
      p["bw1"], p["bb1"], p["bw2"], p["bb2"],
      p["aw1"], p["ab1"], p["aw2"], p["ab2"])

    return h_p[:E]


# ---------------------------------------------------------------------------
# Parameters + pure-JAX reference
# ---------------------------------------------------------------------------
def make_params(key, hidden_channels, int_emb_size, pair_basis_dim,
                triplet_basis_dim, num_before_skip, num_after_skip,
                scale=0.1, dtype=jnp.float32):
    """Deterministic synthetic parameters, stored pre-transposed as (in, out)."""
    H, D = hidden_channels, int_emb_size
    shapes = {
        "w_pair": (pair_basis_dim, H),
        "w_trip": (triplet_basis_dim, D),
        "w_ji": (H, H), "b_ji": (1, H),
        "w_kj": (H, H), "b_kj": (1, H),
        "w_down": (H, D),
        "w_up": (D, H),
        "bw1": (num_before_skip, H, H), "bb1": (num_before_skip, 1, H),
        "bw2": (num_before_skip, H, H), "bb2": (num_before_skip, 1, H),
        "aw1": (num_after_skip, H, H), "ab1": (num_after_skip, 1, H),
        "aw2": (num_after_skip, H, H), "ab2": (num_after_skip, 1, H),
    }
    keys = jax.random.split(key, len(shapes))
    return {name: scale * jax.random.normal(k, shape, dtype=dtype)
            for (name, shape), k in zip(shapes.items(), keys)}


def reference(x, pair_basis, triplet_basis, idx_kj, idx_ji, p):
    """Pure-JAX f32 reference matching the torch forward."""
    silu = jax.nn.silu
    pb = silu(pair_basis @ p["w_pair"])
    tb = silu(triplet_basis @ p["w_trip"])
    x_ji = silu(x @ p["w_ji"] + p["b_ji"])
    x_kj = silu(x @ p["w_kj"] + p["b_kj"])
    x_kj = x_kj * pb
    x_kj = silu(x_kj @ p["w_down"])
    x_kj = x_kj[idx_kj] * tb
    x_kj = jnp.zeros((x.shape[0], x_kj.shape[1]), x.dtype).at[idx_ji].add(x_kj)
    x_kj = silu(x_kj @ p["w_up"])
    h = x_ji + x_kj
    for l in range(p["bw1"].shape[0]):
        h = h + silu(silu(h @ p["bw1"][l] + p["bb1"][l])
                     @ p["bw2"][l] + p["bb2"][l])
    h = h + x
    for l in range(p["aw1"].shape[0]):
        h = h + silu(silu(h @ p["aw1"][l] + p["ab1"][l])
                     @ p["aw2"][l] + p["ab2"][l])
    return h


if __name__ == "__main__":
    hidden_channels = 32
    int_emb_size = 16
    pair_basis_dim = 8
    triplet_basis_dim = 12
    num_before_skip = 1
    num_after_skip = 2
    num_edges = 24        # rows of x / pair_basis
    num_triplets = 56     # rows of triplet_basis / idx_kj / idx_ji

    key = jax.random.PRNGKey(0)
    kx, kp, kt, kkj, kji, kw = jax.random.split(key, 6)

    x = jax.random.normal(kx, (num_edges, hidden_channels), dtype=jnp.float32)
    pair_basis = jax.random.normal(kp, (num_edges, pair_basis_dim),
                                   dtype=jnp.float32)
    triplet_basis = jax.random.normal(kt, (num_triplets, triplet_basis_dim),
                                      dtype=jnp.float32)
    idx_kj = jax.random.randint(kkj, (num_triplets,), 0, num_edges)
    idx_ji = jax.random.randint(kji, (num_triplets,), 0, num_edges)
    params = make_params(kw, hidden_channels, int_emb_size, pair_basis_dim,
                         triplet_basis_dim, num_before_skip, num_after_skip)

    ref = reference(x, pair_basis, triplet_basis, idx_kj, idx_ji, params)

    # Exact (f32) path.
    out = interaction_block(x, pair_basis, triplet_basis, idx_kj, idx_ji,
                            params, use_bf16_dots=False)
    out = jax.block_until_ready(out)
    assert out.shape == x.shape and out.dtype == x.dtype
    assert jnp.allclose(out, ref, atol=1e-4, rtol=1e-4), \
        float(jnp.max(jnp.abs(out - ref)))

    # bf16 data-movement path (v6e/v7x roofline optimization; f32 accumulate).
    out_bf16 = jax.block_until_ready(
        interaction_block(x, pair_basis, triplet_basis, idx_kj, idx_ji,
                          params, use_bf16_dots=True))
    assert jnp.allclose(out_bf16, ref, atol=1e-1, rtol=1e-1), \
        float(jnp.max(jnp.abs(out_bf16 - ref)))

    print("KERNEL_OK")
</pallas_src>

<mosaic_0001>
module attributes {stable_mosaic.version = 11 : i64} {
  func.func @_edge_kernel(%arg0: i32, %arg1: memref<32x32xf32, #tpu.memory_space<vmem>>, %arg2: memref<32x8xf32, #tpu.memory_space<vmem>>, %arg3: memref<8x32xf32, #tpu.memory_space<vmem>>, %arg4: memref<32x32xf32, #tpu.memory_space<vmem>>, %arg5: memref<1x32xf32, #tpu.memory_space<vmem>>, %arg6: memref<32x32xf32, #tpu.memory_space<vmem>>, %arg7: memref<1x32xf32, #tpu.memory_space<vmem>>, %arg8: memref<32x16xf32, #tpu.memory_space<vmem>>, %arg9: memref<32x32xf32, #tpu.memory_space<vmem>>, %arg10: memref<32x16xf32, #tpu.memory_space<vmem>>) attributes {dimension_semantics = [#tpu.dimension_semantics<parallel>], iteration_bounds = array<i64: 1>, scalar_prefetch = 0 : i64, scratch_operands = 0 : i64, tpu.core_type = #tpu.core_type<tc>, window_params = [{transform_indices = @transform_0, window_bounds = array<i64: 32, 32>}, {transform_indices = @transform_1, window_bounds = array<i64: 32, 8>}, {pipeline_mode = #tpu.pipeline_mode<synchronous>, transform_indices = @transform_2, window_bounds = array<i64: 8, 32>}, {pipeline_mode = #tpu.pipeline_mode<synchronous>, transform_indices = @transform_3, window_bounds = array<i64: 32, 32>}, {pipeline_mode = #tpu.pipeline_mode<synchronous>, transform_indices = @transform_4, window_bounds = array<i64: 1, 32>}, {pipeline_mode = #tpu.pipeline_mode<synchronous>, transform_indices = @transform_5, window_bounds = array<i64: 32, 32>}, {pipeline_mode = #tpu.pipeline_mode<synchronous>, transform_indices = @transform_6, window_bounds = array<i64: 1, 32>}, {pipeline_mode = #tpu.pipeline_mode<synchronous>, transform_indices = @transform_7, window_bounds = array<i64: 32, 16>}, {transform_indices = @transform_8, window_bounds = array<i64: 32, 32>}, {transform_indices = @transform_9, window_bounds = array<i64: 32, 16>}]} {
    %c0 = arith.constant 0 : index
    %c0_0 = arith.constant 0 : index
    %0 = vector.load %arg1[%c0, %c0_0] : memref<32x32xf32, #tpu.memory_space<vmem>>, vector<32x32xf32>
    %c0_1 = arith.constant 0 : index
    %c0_2 = arith.constant 0 : index
    %1 = vector.load %arg2[%c0_1, %c0_2] : memref<32x8xf32, #tpu.memory_space<vmem>>, vector<32x8xf32>
    %c0_3 = arith.constant 0 : index
    %c0_4 = arith.constant 0 : index
    %2 = vector.load %arg3[%c0_3, %c0_4] : memref<8x32xf32, #tpu.memory_space<vmem>>, vector<8x32xf32>
    %cst = arith.constant dense<0.000000e+00> : vector<32x32xf32>
    %3 = tpu.matmul %1, %2, %cst {dimension_numbers = #tpu.dot_dimension_numbers<[1], [0], [0], [1], [0, 0, 1, 1], [], []>} : vector<32x8xf32>, vector<8x32xf32>, vector<32x32xf32> -> vector<32x32xf32>
    %4 = arith.negf %3 : vector<32x32xf32>
    %5 = math.exp %4 : vector<32x32xf32>
    %cst_5 = arith.constant 1.000000e+00 : f32
    %6 = vector.broadcast %cst_5 : f32 to vector<32x32xf32>
    %7 = arith.addf %6, %5 : vector<32x32xf32>
    %8 = arith.divf %6, %7 : vector<32x32xf32>
    %9 = arith.mulf %3, %8 : vector<32x32xf32>
    %c0_6 = arith.constant 0 : index
    %c0_7 = arith.constant 0 : index
    %10 = vector.load %arg4[%c0_6, %c0_7] : memref<32x32xf32, #tpu.memory_space<vmem>>, vector<32x32xf32>
    %cst_8 = arith.constant dense<0.000000e+00> : vector<32x32xf32>
    %11 = tpu.matmul %0, %10, %cst_8 {dimension_numbers = #tpu.dot_dimension_numbers<[1], [0], [0], [1], [0, 0, 1, 1], [], []>} : vector<32x32xf32>, vector<32x32xf32>, vector<32x32xf32> -> vector<32x32xf32>
    %c0_9 = arith.constant 0 : index
    %c0_10 = arith.constant 0 : index
    %12 = vector.load %arg5[%c0_9, %c0_10] : memref<1x32xf32, #tpu.memory_space<vmem>>, vector<1x32xf32>
    %13 = vector.broadcast %12 : vector<1x32xf32> to vector<32x32xf32>
    %14 = arith.addf %11, %13 : vector<32x32xf32>
    %15 = arith.negf %14 : vector<32x32xf32>
    %16 = math.exp %15 : vector<32x32xf32>
    %cst_11 = arith.constant 1.000000e+00 : f32
    %17 = vector.broadcast %cst_11 : f32 to vector<32x32xf32>
    %18 = arith.addf %17, %16 : vector<32x32xf32>
    %19 = arith.divf %17, %18 : vector<32x32xf32>
    %20 = arith.mulf %14, %19 : vector<32x32xf32>
    %c0_12 = arith.constant 0 : index
    %c0_13 = arith.constant 0 : index
    %21 = vector.load %arg6[%c0_12, %c0_13] : memref<32x32xf32, #tpu.memory_space<vmem>>, vector<32x32xf32>
    %cst_14 = arith.constant dense<0.000000e+00> : vector<32x32xf32>
    %22 = tpu.matmul %0, %21, %cst_14 {dimension_numbers = #tpu.dot_dimension_numbers<[1], [0], [0], [1], [0, 0, 1, 1], [], []>} : vector<32x32xf32>, vector<32x32xf32>, vector<32x32xf32> -> vector<32x32xf32>
    %c0_15 = arith.constant 0 : index
    %c0_16 = arith.constant 0 : index
    %23 = vector.load %arg7[%c0_15, %c0_16] : memref<1x32xf32, #tpu.memory_space<vmem>>, vector<1x32xf32>
    %24 = vector.broadcast %23 : vector<1x32xf32> to vector<32x32xf32>
    %25 = arith.addf %22, %24 : vector<32x32xf32>
    %26 = arith.negf %25 : vector<32x32xf32>
    %27 = math.exp %26 : vector<32x32xf32>
    %cst_17 = arith.constant 1.000000e+00 : f32
    %28 = vector.broadcast %cst_17 : f32 to vector<32x32xf32>
    %29 = arith.addf %28, %27 : vector<32x32xf32>
    %30 = arith.divf %28, %29 : vector<32x32xf32>
    %31 = arith.mulf %25, %30 : vector<32x32xf32>
    %32 = arith.mulf %31, %9 : vector<32x32xf32>
    %c0_18 = arith.constant 0 : index
    %c0_19 = arith.constant 0 : index
    %33 = vector.load %arg8[%c0_18, %c0_19] : memref<32x16xf32, #tpu.memory_space<vmem>>, vector<32x16xf32>
    %cst_20 = arith.constant dense<0.000000e+00> : vector<32x16xf32>
    %34 = tpu.matmul %32, %33, %cst_20 {dimension_numbers = #tpu.dot_dimension_numbers<[1], [0], [0], [1], [0, 0, 1, 1], [], []>} : vector<32x32xf32>, vector<32x16xf32>, vector<32x16xf32> -> vector<32x16xf32>
    %35 = arith.negf %34 : vector<32x16xf32>
    %36 = math.exp %35 : vector<32x16xf32>
    %cst_21 = arith.constant 1.000000e+00 : f32
    %37 = vector.broadcast %cst_21 : f32 to vector<32x16xf32>
    %38 = arith.addf %37, %36 : vector<32x16xf32>
    %39 = arith.divf %37, %38 : vector<32x16xf32>
    %40 = arith.mulf %34, %39 : vector<32x16xf32>
    %c0_22 = arith.constant 0 : index
    %c0_23 = arith.constant 0 : index
    %41 = vector.load %arg9[%c0_22, %c0_23] : memref<32x32xf32, #tpu.memory_space<vmem>>, vector<32x32xf32>
    tpu.vector_store %arg9[%c0_22, %c0_23], %20 {strides = array<i32>} : memref<32x32xf32, #tpu.memory_space<vmem>>, vector<32x32xf32>,
    %c0_24 = arith.constant 0 : index
    %c0_25 = arith.constant 0 : index
    %42 = vector.load %arg10[%c0_24, %c0_25] : memref<32x16xf32, #tpu.memory_space<vmem>>, vector<32x16xf32>
    tpu.vector_store %arg10[%c0_24, %c0_25], %40 {strides = array<i32>} : memref<32x16xf32, #tpu.memory_space<vmem>>, vector<32x16xf32>,
    return
  }
  func.func @transform_0(%arg0: i32) -> (i32, i32) {
    %c0_i32 = arith.constant 0 : i32
    %c0_i32_0 = arith.constant 0 : i32
    return %arg0, %c0_i32 : i32, i32
  }
  func.func @transform_1(%arg0: i32) -> (i32, i32) {
    %c0_i32 = arith.constant 0 : i32
    %c0_i32_0 = arith.constant 0 : i32
    return %arg0, %c0_i32 : i32, i32
  }
  func.func @transform_2(%arg0: i32) -> (i32, i32) {
    %c0_i32 = arith.constant 0 : i32
    %c0_i32_0 = arith.constant 0 : i32
    %c0_i32_1 = arith.constant 0 : i32
    return %c0_i32, %c0_i32_0 : i32, i32
  }
  func.func @transform_3(%arg0: i32) -> (i32, i32) {
    %c0_i32 = arith.constant 0 : i32
    %c0_i32_0 = arith.constant 0 : i32
    %c0_i32_1 = arith.constant 0 : i32
    return %c0_i32, %c0_i32_0 : i32, i32
  }
  func.func @transform_4(%arg0: i32) -> (i32, i32) {
    %c0_i32 = arith.constant 0 : i32
    %c0_i32_0 = arith.constant 0 : i32
    %c0_i32_1 = arith.constant 0 : i32
    return %c0_i32, %c0_i32_0 : i32, i32
  }
  func.func @transform_5(%arg0: i32) -> (i32, i32) {
    %c0_i32 = arith.constant 0 : i32
    %c0_i32_0 = arith.constant 0 : i32
    %c0_i32_1 = arith.constant 0 : i32
    return %c0_i32, %c0_i32_0 : i32, i32
  }
  func.func @transform_6(%arg0: i32) -> (i32, i32) {
    %c0_i32 = arith.constant 0 : i32
    %c0_i32_0 = arith.constant 0 : i32
    %c0_i32_1 = arith.constant 0 : i32
    return %c0_i32, %c0_i32_0 : i32, i32
  }
  func.func @transform_7(%arg0: i32) -> (i32, i32) {
    %c0_i32 = arith.constant 0 : i32
    %c0_i32_0 = arith.constant 0 : i32
    %c0_i32_1 = arith.constant 0 : i32
    return %c0_i32, %c0_i32_0 : i32, i32
  }
  func.func @transform_8(%arg0: i32) -> (i32, i32) {
    %c0_i32 = arith.constant 0 : i32
    %c0_i32_0 = arith.constant 0 : i32
    return %arg0, %c0_i32 : i32, i32
  }
  func.func @transform_9(%arg0: i32) -> (i32, i32) {
    %c0_i32 = arith.constant 0 : i32
    %c0_i32_0 = arith.constant 0 : i32
    return %arg0, %c0_i32 : i32, i32
  }
}

module attributes {stable_mosaic.version = 11 : i64} {
  func.func @_triplet_kernel(%arg0: i32, %arg1: memref<64x12xf32, #tpu.memory_space<vmem>>, %arg2: memref<64x16xf32, #tpu.memory_space<vmem>>, %arg3: memref<12x16xf32, #tpu.memory_space<vmem>>, %arg4: memref<64x16xf32, #tpu.memory_space<vmem>>) attributes {dimension_semantics = [#tpu.dimension_semantics<parallel>], iteration_bounds = array<i64: 1>, scalar_prefetch = 0 : i64, scratch_operands = 0 : i64, tpu.core_type = #tpu.core_type<tc>, window_params = [{transform_indices = @transform_0, window_bounds = array<i64: 64, 12>}, {transform_indices = @transform_1, window_bounds = array<i64: 64, 16>}, {pipeline_mode = #tpu.pipeline_mode<synchronous>, transform_indices = @transform_2, window_bounds = array<i64: 12, 16>}, {transform_indices = @transform_3, window_bounds = array<i64: 64, 16>}]} {
    %c0 = arith.constant 0 : index
    %c0_0 = arith.constant 0 : index
    %0 = vector.load %arg1[%c0, %c0_0] : memref<64x12xf32, #tpu.memory_space<vmem>>, vector<64x12xf32>
    %c0_1 = arith.constant 0 : index
    %c0_2 = arith.constant 0 : index
    %1 = vector.load %arg3[%c0_1, %c0_2] : memref<12x16xf32, #tpu.memory_space<vmem>>, vector<12x16xf32>
    %cst = arith.constant dense<0.000000e+00> : vector<64x16xf32>
    %2 = tpu.matmul %0, %1, %cst {dimension_numbers = #tpu.dot_dimension_numbers<[1], [0], [0], [1], [0, 0, 1, 1], [], []>} : vector<64x12xf32>, vector<12x16xf32>, vector<64x16xf32> -> vector<64x16xf32>
    %3 = arith.negf %2 : vector<64x16xf32>
    %4 = math.exp %3 : vector<64x16xf32>
    %cst_3 = arith.constant 1.000000e+00 : f32
    %5 = vector.broadcast %cst_3 : f32 to vector<64x16xf32>
    %6 = arith.addf %5, %4 : vector<64x16xf32>
    %7 = arith.divf %5, %6 : vector<64x16xf32>
    %8 = arith.mulf %2, %7 : vector<64x16xf32>
    %c0_4 = arith.constant 0 : index
    %c0_5 = arith.constant 0 : index
    %9 = vector.load %arg2[%c0_4, %c0_5] : memref<64x16xf32, #tpu.memory_space<vmem>>, vector<64x16xf32>
    %10 = arith.mulf %8, %9 : vector<64x16xf32>
    %c0_6 = arith.constant 0 : index
    %c0_7 = arith.constant 0 : index
    %11 = vector.load %arg4[%c0_6, %c0_7] : memref<64x16xf32, #tpu.memory_space<vmem>>, vector<64x16xf32>
    tpu.vector_store %arg4[%c0_6, %c0_7], %10 {strides = array<i32>} : memref<64x16xf32, #tpu.memory_space<vmem>>, vector<64x16xf32>,
    return
  }
  func.func @transform_0(%arg0: i32) -> (i32, i32) {
    %c0_i32 = arith.constant 0 : i32
    %c0_i32_0 = arith.constant 0 : i32
    return %arg0, %c0_i32 : i32, i32
  }
  func.func @transform_1(%arg0: i32) -> (i32, i32) {
    %c0_i32 = arith.constant 0 : i32
    %c0_i32_0 = arith.constant 0 : i32
    return %arg0, %c0_i32 : i32, i32
  }
  func.func @transform_2(%arg0: i32) -> (i32, i32) {
    %c0_i32 = arith.constant 0 : i32
    %c0_i32_0 = arith.constant 0 : i32
    %c0_i32_1 = arith.constant 0 : i32
    return %c0_i32, %c0_i32_0 : i32, i32
  }
  func.func @transform_3(%arg0: i32) -> (i32, i32) {
    %c0_i32 = arith.constant 0 : i32
    %c0_i32_0 = arith.constant 0 : i32
    return %arg0, %c0_i32 : i32, i32
  }
}

module attributes {stable_mosaic.version = 11 : i64} {
  func.func @_output_kernel(%arg0: i32, %arg1: memref<32x16xf32, #tpu.memory_space<vmem>>, %arg2: memref<32x32xf32, #tpu.memory_space<vmem>>, %arg3: memref<32x32xf32, #tpu.memory_space<vmem>>, %arg4: memref<16x32xf32, #tpu.memory_space<vmem>>, %arg5: memref<1x32x32xf32, #tpu.memory_space<vmem>>, %arg6: memref<1x1x32xf32, #tpu.memory_space<vmem>>, %arg7: memref<1x32x32xf32, #tpu.memory_space<vmem>>, %arg8: memref<1x1x32xf32, #tpu.memory_space<vmem>>, %arg9: memref<2x32x32xf32, #tpu.memory_space<vmem>>, %arg10: memref<2x1x32xf32, #tpu.memory_space<vmem>>, %arg11: memref<2x32x32xf32, #tpu.memory_space<vmem>>, %arg12: memref<2x1x32xf32, #tpu.memory_space<vmem>>, %arg13: memref<32x32xf32, #tpu.memory_space<vmem>>) attributes {dimension_semantics = [#tpu.dimension_semantics<parallel>], iteration_bounds = array<i64: 1>, scalar_prefetch = 0 : i64, scratch_operands = 0 : i64, tpu.core_type = #tpu.core_type<tc>, window_params = [{transform_indices = @transform_0, window_bounds = array<i64: 32, 16>}, {transform_indices = @transform_1, window_bounds = array<i64: 32, 32>}, {transform_indices = @transform_2, window_bounds = array<i64: 32, 32>}, {pipeline_mode = #tpu.pipeline_mode<synchronous>, transform_indices = @transform_3, window_bounds = array<i64: 16, 32>}, {pipeline_mode = #tpu.pipeline_mode<synchronous>, transform_indices = @transform_4, window_bounds = array<i64: 1, 32, 32>}, {pipeline_mode = #tpu.pipeline_mode<synchronous>, transform_indices = @transform_5, window_bounds = array<i64: 1, 1, 32>}, {pipeline_mode = #tpu.pipeline_mode<synchronous>, transform_indices = @transform_6, window_bounds = array<i64: 1, 32, 32>}, {pipeline_mode = #tpu.pipeline_mode<synchronous>, transform_indices = @transform_7, window_bounds = array<i64: 1, 1, 32>}, {pipeline_mode = #tpu.pipeline_mode<synchronous>, transform_indices = @transform_8, window_bounds = array<i64: 2, 32, 32>}, {pipeline_mode = #tpu.pipeline_mode<synchronous>, transform_indices = @transform_9, window_bounds = array<i64: 2, 1, 32>}, {pipeline_mode = #tpu.pipeline_mode<synchronous>, transform_indices = @transform_10, window_bounds = array<i64: 2, 32, 32>}, {pipeline_mode = #tpu.pipeline_mode<synchronous>, transform_indices = @transform_11, window_bounds = array<i64: 2, 1, 32>}, {transform_indices = @transform_12, window_bounds = array<i64: 32, 32>}]} {
    %c0 = arith.constant 0 : index
    %c0_0 = arith.constant 0 : index
    %0 = vector.load %arg1[%c0, %c0_0] : memref<32x16xf32, #tpu.memory_space<vmem>>, vector<32x16xf32>
    %c0_1 = arith.constant 0 : index
    %c0_2 = arith.constant 0 : index
    %1 = vector.load %arg4[%c0_1, %c0_2] : memref<16x32xf32, #tpu.memory_space<vmem>>, vector<16x32xf32>
    %cst = arith.constant dense<0.000000e+00> : vector<32x32xf32>
    %2 = tpu.matmul %0, %1, %cst {dimension_numbers = #tpu.dot_dimension_numbers<[1], [0], [0], [1], [0, 0, 1, 1], [], []>} : vector<32x16xf32>, vector<16x32xf32>, vector<32x32xf32> -> vector<32x32xf32>
    %3 = arith.negf %2 : vector<32x32xf32>
    %4 = math.exp %3 : vector<32x32xf32>
    %cst_3 = arith.constant 1.000000e+00 : f32
    %5 = vector.broadcast %cst_3 : f32 to vector<32x32xf32>
    %6 = arith.addf %5, %4 : vector<32x32xf32>
    %7 = arith.divf %5, %6 : vector<32x32xf32>
    %8 = arith.mulf %2, %7 : vector<32x32xf32>
    %c0_4 = arith.constant 0 : index
    %c0_5 = arith.constant 0 : index
    %9 = vector.load %arg2[%c0_4, %c0_5] : memref<32x32xf32, #tpu.memory_space<vmem>>, vector<32x32xf32>
    %10 = arith.addf %9, %8 : vector<32x32xf32>
    %c0_6 = arith.constant 0 : index
    %c0_7 = arith.constant 0 : index
    %c0_8 = arith.constant 0 : index
    %11 = vector.load %arg5[%c0_6, %c0_7, %c0_8] : memref<1x32x32xf32, #tpu.memory_space<vmem>>, vector<1x32x32xf32>
    %12 = vector.shape_cast %11 : vector<1x32x32xf32> to vector<32x32xf32>
    %c0_9 = arith.constant 0 : index
    %c0_10 = arith.constant 0 : index
    %c0_11 = arith.constant 0 : index
    %13 = vector.load %arg6[%c0_9, %c0_10, %c0_11] : memref<1x1x32xf32, #tpu.memory_space<vmem>>, vector<1x1x32xf32>
    %14 = vector.shape_cast %13 : vector<1x1x32xf32> to vector<1x32xf32>
    %c0_12 = arith.constant 0 : index
    %c0_13 = arith.constant 0 : index
    %c0_14 = arith.constant 0 : index
    %15 = vector.load %arg7[%c0_12, %c0_13, %c0_14] : memref<1x32x32xf32, #tpu.memory_space<vmem>>, vector<1x32x32xf32>
    %16 = vector.shape_cast %15 : vector<1x32x32xf32> to vector<32x32xf32>
    %c0_15 = arith.constant 0 : index
    %c0_16 = arith.constant 0 : index
    %c0_17 = arith.constant 0 : index
    %17 = vector.load %arg8[%c0_15, %c0_16, %c0_17] : memref<1x1x32xf32, #tpu.memory_space<vmem>>, vector<1x1x32xf32>
    %18 = vector.shape_cast %17 : vector<1x1x32xf32> to vector<1x32xf32>
    %cst_18 = arith.constant dense<0.000000e+00> : vector<32x32xf32>
    %19 = tpu.matmul %10, %12, %cst_18 {dimension_numbers = #tpu.dot_dimension_numbers<[1], [0], [0], [1], [0, 0, 1, 1], [], []>} : vector<32x32xf32>, vector<32x32xf32>, vector<32x32xf32> -> vector<32x32xf32>
    %20 = vector.broadcast %14 : vector<1x32xf32> to vector<32x32xf32>
    %21 = arith.addf %19, %20 : vector<32x32xf32>
    %22 = arith.negf %21 : vector<32x32xf32>
    %23 = math.exp %22 : vector<32x32xf32>
    %cst_19 = arith.constant 1.000000e+00 : f32
    %24 = vector.broadcast %cst_19 : f32 to vector<32x32xf32>
    %25 = arith.addf %24, %23 : vector<32x32xf32>
    %26 = arith.divf %24, %25 : vector<32x32xf32>
    %27 = arith.mulf %21, %26 : vector<32x32xf32>
    %cst_20 = arith.constant dense<0.000000e+00> : vector<32x32xf32>
    %28 = tpu.matmul %27, %16, %cst_20 {dimension_numbers = #tpu.dot_dimension_numbers<[1], [0], [0], [1], [0, 0, 1, 1], [], []>} : vector<32x32xf32>, vector<32x32xf32>, vector<32x32xf32> -> vector<32x32xf32>
    %29 = vector.broadcast %18 : vector<1x32xf32> to vector<32x32xf32>
    %30 = arith.addf %28, %29 : vector<32x32xf32>
    %31 = arith.negf %30 : vector<32x32xf32>
    %32 = math.exp %31 : vector<32x32xf32>
    %cst_21 = arith.constant 1.000000e+00 : f32
    %33 = vector.broadcast %cst_21 : f32 to vector<32x32xf32>
    %34 = arith.addf %33, %32 : vector<32x32xf32>
    %35 = arith.divf %33, %34 : vector<32x32xf32>
    %36 = arith.mulf %30, %35 : vector<32x32xf32>
    %37 = arith.addf %10, %36 : vector<32x32xf32>
    %c0_22 = arith.constant 0 : index
    %c0_23 = arith.constant 0 : index
    %38 = vector.load %arg3[%c0_22, %c0_23] : memref<32x32xf32, #tpu.memory_space<vmem>>, vector<32x32xf32>
    %39 = arith.addf %37, %38 : vector<32x32xf32>
    %c0_24 = arith.constant 0 : index
    %c0_25 = arith.constant 0 : index
    %c0_26 = arith.constant 0 : index
    %40 = vector.load %arg9[%c0_24, %c0_25, %c0_26] : memref<2x32x32xf32, #tpu.memory_space<vmem>>, vector<1x32x32xf32>
    %41 = vector.shape_cast %40 : vector<1x32x32xf32> to vector<32x32xf32>
    %c0_27 = arith.constant 0 : index
    %c0_28 = arith.constant 0 : index
    %c0_29 = arith.constant 0 : index
    %42 = vector.load %arg10[%c0_27, %c0_28, %c0_29] : memref<2x1x32xf32, #tpu.memory_space<vmem>>, vector<1x1x32xf32>
    %43 = vector.shape_cast %42 : vector<1x1x32xf32> to vector<1x32xf32>
    %c0_30 = arith.constant 0 : index
    %c0_31 = arith.constant 0 : index
    %c0_32 = arith.constant 0 : index
    %44 = vector.load %arg11[%c0_30, %c0_31, %c0_32] : memref<2x32x32xf32, #tpu.memory_space<vmem>>, vector<1x32x32xf32>
    %45 = vector.shape_cast %44 : vector<1x32x32xf32> to vector<32x32xf32>
    %c0_33 = arith.constant 0 : index
    %c0_34 = arith.constant 0 : index
    %c0_35 = arith.constant 0 : index
    %46 = vector.load %arg12[%c0_33, %c0_34, %c0_35] : memref<2x1x32xf32, #tpu.memory_space<vmem>>, vector<1x1x32xf32>
    %47 = vector.shape_cast %46 : vector<1x1x32xf32> to vector<1x32xf32>
    %cst_36 = arith.constant dense<0.000000e+00> : vector<32x32xf32>
    %48 = tpu.matmul %39, %41, %cst_36 {dimension_numbers = #tpu.dot_dimension_numbers<[1], [0], [0], [1], [0, 0, 1, 1], [], []>} : vector<32x32xf32>, vector<32x32xf32>, vector<32x32xf32> -> vector<32x32xf32>
    %49 = vector.broadcast %43 : vector<1x32xf32> to vector<32x32xf32>
    %50 = arith.addf %48, %49 : vector<32x32xf32>
    %51 = arith.negf %50 : vector<32x32xf32>
    %52 = math.exp %51 : vector<32x32xf32>
    %cst_37 = arith.constant 1.000000e+00 : f32
    %53 = vector.broadcast %cst_37 : f32 to vector<32x32xf32>
    %54 = arith.addf %53, %52 : vector<32x32xf32>
    %55 = arith.divf %53, %54 : vector<32x32xf32>
    %56 = arith.mulf %50, %55 : vector<32x32xf32>
    %cst_38 = arith.constant dense<0.000000e+00> : vector<32x32xf32>
    %57 = tpu.matmul %56, %45, %cst_38 {dimension_numbers = #tpu.dot_dimension_numbers<[1], [0], [0], [1], [0, 0, 1, 1], [], []>} : vector<32x32xf32>, vector<32x32xf32>, vector<32x32xf32> -> vector<32x32xf32>
    %58 = vector.broadcast %47 : vector<1x32xf32> to vector<32x32xf32>
    %59 = arith.addf %57, %58 : vector<32x32xf32>
    %60 = arith.negf %59 : vector<32x32xf32>
    %61 = math.exp %60 : vector<32x32xf32>
    %cst_39 = arith.constant 1.000000e+00 : f32
    %62 = vector.broadcast %cst_39 : f32 to vector<32x32xf32>
    %63 = arith.addf %62, %61 : vector<32x32xf32>
    %64 = arith.divf %62, %63 : vector<32x32xf32>
    %65 = arith.mulf %59, %64 : vector<32x32xf32>
    %66 = arith.addf %39, %65 : vector<32x32xf32>
    %c1 = arith.constant 1 : index
    %c0_40 = arith.constant 0 : index
    %c0_41 = arith.constant 0 : index
    %67 = vector.load %arg9[%c1, %c0_40, %c0_41] : memref<2x32x32xf32, #tpu.memory_space<vmem>>, vector<1x32x32xf32>
    %68 = vector.shape_cast %67 : vector<1x32x32xf32> to vector<32x32xf32>
    %c1_42 = arith.constant 1 : index
    %c0_43 = arith.constant 0 : index
    %c0_44 = arith.constant 0 : index
    %69 = vector.load %arg10[%c1_42, %c0_43, %c0_44] : memref<2x1x32xf32, #tpu.memory_space<vmem>>, vector<1x1x32xf32>
    %70 = vector.shape_cast %69 : vector<1x1x32xf32> to vector<1x32xf32>
    %c1_45 = arith.constant 1 : index
    %c0_46 = arith.constant 0 : index
    %c0_47 = arith.constant 0 : index
    %71 = vector.load %arg11[%c1_45, %c0_46, %c0_47] : memref<2x32x32xf32, #tpu.memory_space<vmem>>, vector<1x32x32xf32>
    %72 = vector.shape_cast %71 : vector<1x32x32xf32> to vector<32x32xf32>
    %c1_48 = arith.constant 1 : index
    %c0_49 = arith.constant 0 : index
    %c0_50 = arith.constant 0 : index
    %73 = vector.load %arg12[%c1_48, %c0_49, %c0_50] : memref<2x1x32xf32, #tpu.memory_space<vmem>>, vector<1x1x32xf32>
    %74 = vector.shape_cast %73 : vector<1x1x32xf32> to vector<1x32xf32>
    %cst_51 = arith.constant dense<0.000000e+00> : vector<32x32xf32>
    %75 = tpu.matmul %66, %68, %cst_51 {dimension_numbers = #tpu.dot_dimension_numbers<[1], [0], [0], [1], [0, 0, 1, 1], [], []>} : vector<32x32xf32>, vector<32x32xf32>, vector<32x32xf32> -> vector<32x32xf32>
    %76 = vector.broadcast %70 : vector<1x32xf32> to vector<32x32xf32>
    %77 = arith.addf %75, %76 : vector<32x32xf32>
    %78 = arith.negf %77 : vector<32x32xf32>
    %79 = math.exp %78 : vector<32x32xf32>
    %cst_52 = arith.constant 1.000000e+00 : f32
    %80 = vector.broadcast %cst_52 : f32 to vector<32x32xf32>
    %81 = arith.addf %80, %79 : vector<32x32xf32>
    %82 = arith.divf %80, %81 : vector<32x32xf32>
    %83 = arith.mulf %77, %82 : vector<32x32xf32>
    %cst_53 = arith.constant dense<0.000000e+00> : vector<32x32xf32>
    %84 = tpu.matmul %83, %72, %cst_53 {dimension_numbers = #tpu.dot_dimension_numbers<[1], [0], [0], [1], [0, 0, 1, 1], [], []>} : vector<32x32xf32>, vector<32x32xf32>, vector<32x32xf32> -> vector<32x32xf32>
    %85 = vector.broadcast %74 : vector<1x32xf32> to vector<32x32xf32>
    %86 = arith.addf %84, %85 : vector<32x32xf32>
    %87 = arith.negf %86 : vector<32x32xf32>
    %88 = math.exp %87 : vector<32x32xf32>
    %cst_54 = arith.constant 1.000000e+00 : f32
    %89 = vector.broadcast %cst_54 : f32 to vector<32x32xf32>
    %90 = arith.addf %89, %88 : vector<32x32xf32>
    %91 = arith.divf %89, %90 : vector<32x32xf32>
    %92 = arith.mulf %86, %91 : vector<32x32xf32>
    %93 = arith.addf %66, %92 : vector<32x32xf32>
    %c0_55 = arith.constant 0 : index
    %c0_56 = arith.constant 0 : index
    %94 = vector.load %arg13[%c0_55, %c0_56] : memref<32x32xf32, #tpu.memory_space<vmem>>, vector<32x32xf32>
    tpu.vector_store %arg13[%c0_55, %c0_56], %93 {strides = array<i32>} : memref<32x32xf32, #tpu.memory_space<vmem>>, vector<32x32xf32>,
    return
  }
  func.func @transform_0(%arg0: i32) -> (i32, i32) {
    %c0_i32 = arith.constant 0 : i32
    %c0_i32_0 = arith.constant 0 : i32
    return %arg0, %c0_i32 : i32, i32
  }
  func.func @transform_1(%arg0: i32) -> (i32, i32) {
    %c0_i32 = arith.constant 0 : i32
    %c0_i32_0 = arith.constant 0 : i32
    return %arg0, %c0_i32 : i32, i32
  }
  func.func @transform_2(%arg0: i32) -> (i32, i32) {
    %c0_i32 = arith.constant 0 : i32
    %c0_i32_0 = arith.constant 0 : i32
    return %arg0, %c0_i32 : i32, i32
  }
  func.func @transform_3(%arg0: i32) -> (i32, i32) {
    %c0_i32 = arith.constant 0 : i32
    %c0_i32_0 = arith.constant 0 : i32
    %c0_i32_1 = arith.constant 0 : i32
    return %c0_i32, %c0_i32_0 : i32, i32
  }
  func.func @transform_4(%arg0: i32) -> (i32, i32, i32) {
    %c0_i32 = arith.constant 0 : i32
    %c0_i32_0 = arith.constant 0 : i32
    %c0_i32_1 = arith.constant 0 : i32
    %c0_i32_2 = arith.constant 0 : i32
    return %c0_i32, %c0_i32_0, %c0_i32_1 : i32, i32, i32
  }
  func.func @transform_5(%arg0: i32) -> (i32, i32, i32) {
    %c0_i32 = arith.constant 0 : i32
    %c0_i32_0 = arith.constant 0 : i32
    %c0_i32_1 = arith.constant 0 : i32
    %c0_i32_2 = arith.constant 0 : i32
    return %c0_i32, %c0_i32_0, %c0_i32_1 : i32, i32, i32
  }
  func.func @transform_6(%arg0: i32) -> (i32, i32, i32) {
    %c0_i32 = arith.constant 0 : i32
    %c0_i32_0 = arith.constant 0 : i32
    %c0_i32_1 = arith.constant 0 : i32
    %c0_i32_2 = arith.constant 0 : i32
    return %c0_i32, %c0_i32_0, %c0_i32_1 : i32, i32, i32
  }
  func.func @transform_7(%arg0: i32) -> (i32, i32, i32) {
    %c0_i32 = arith.constant 0 : i32
    %c0_i32_0 = arith.constant 0 : i32
    %c0_i32_1 = arith.constant 0 : i32
    %c0_i32_2 = arith.constant 0 : i32
    return %c0_i32, %c0_i32_0, %c0_i32_1 : i32, i32, i32
  }
  func.func @transform_8(%arg0: i32) -> (i32, i32, i32) {
    %c0_i32 = arith.constant 0 : i32
    %c0_i32_0 = arith.constant 0 : i32
    %c0_i32_1 = arith.constant 0 : i32
    %c0_i32_2 = arith.constant 0 : i32
    return %c0_i32, %c0_i32_0, %c0_i32_1 : i32, i32, i32
  }
  func.func @transform_9(%arg0: i32) -> (i32, i32, i32) {
    %c0_i32 = arith.constant 0 : i32
    %c0_i32_0 = arith.constant 0 : i32
    %c0_i32_1 = arith.constant 0 : i32
    %c0_i32_2 = arith.constant 0 : i32
    return %c0_i32, %c0_i32_0, %c0_i32_1 : i32, i32, i32
  }
  func.func @transform_10(%arg0: i32) -> (i32, i32, i32) {
    %c0_i32 = arith.constant 0 : i32
    %c0_i32_0 = arith.constant 0 : i32
    %c0_i32_1 = arith.constant 0 : i32
    %c0_i32_2 = arith.constant 0 : i32
    return %c0_i32, %c0_i32_0, %c0_i32_1 : i32, i32, i32
  }
  func.func @transform_11(%arg0: i32) -> (i32, i32, i32) {
    %c0_i32 = arith.constant 0 : i32
    %c0_i32_0 = arith.constant 0 : i32
    %c0_i32_1 = arith.constant 0 : i32
    %c0_i32_2 = arith.constant 0 : i32
    return %c0_i32, %c0_i32_0, %c0_i32_1 : i32, i32, i32
  }
  func.func @transform_12(%arg0: i32) -> (i32, i32) {
    %c0_i32 = arith.constant 0 : i32
    %c0_i32_0 = arith.constant 0 : i32
    return %arg0, %c0_i32 : i32, i32
  }
}

</mosaic_0001>

<llo_original>
// kernel: interaction_block.4
$region0: #{interaction_block.4}
  #allocation0 [shape = 'u32[]', space=smem, size = 0x4, offset = 0x4, fixed_abs, tag = 'smem constant byte address 0x4 - core index']
  #allocation1 [shape = 'u32[144,128]{1,0:T(1,128)}', space=vmem, size = 0x12000, scoped, tag = 'internal scratch']
  %s0 = inlined_call_operand.vmem [shape: f32[64,12], index: 0, kind: input, shape index: {}]
  %s1 = inlined_call_operand.vmem [shape: f32[64,16], index: 1, kind: input, shape index: {}]
  %s2 = inlined_call_operand.vmem [shape: f32[12,16], index: 2, kind: input, shape index: {}]
  %s3 = inlined_call_operand.vmem [shape: f32[64,16], index: 3, kind: output, shape index: {}]
  %s4 = sld [smem:[#allocation0]]
  $region22: #{interaction_block.4} parent=0
    _
  %s6 = ssub.s32 1, %s4
  %s7 = scalar_select 0, %s6, %s4
  // Predicated region
  $region2: #{interaction_block.4} parent=0 // pred_check
    _
  $region3: #{interaction_block.4} parent=0 // pred_check_branch
    %9 = sbr.rel (0) target = $region5
  $region4: #{interaction_block.4} parent=0 // pred_region
    _
  $region5: #{interaction_block.4} parent=0 // pred_fallthru
    _
  // Predicated region
  $region6: #{interaction_block.4} parent=0 // pred_check
    _
  $region7: #{interaction_block.4} parent=0 // pred_check_branch
    %11 = sbr.rel (0) target = $region9
  $region8: #{interaction_block.4} parent=0 // pred_region
    _
  $region9: #{interaction_block.4} parent=0 // pred_fallthru
    _
  // Predicated region
  $region10: #{interaction_block.4} parent=0 // pred_check
    _
  $region11: #{interaction_block.4} parent=0 // pred_check_branch
    %13 = sbr.rel (0) target = $region13
  $region12: #{interaction_block.4} parent=0 // pred_region
    _
  $region13: #{interaction_block.4} parent=0 // pred_fallthru
    _
  %v14 = vld [vmem:[%s0] sm:$0xff]
  %v15 = vld [vmem:[%s0 + $0x8] sm:$0xff]
  %v16 = vld [vmem:[%s0 + $0x10] sm:$0xff]
  %v17 = vld [vmem:[%s0 + $0x18] sm:$0xff]
  %v18 = vld [vmem:[%s0 + $0x20] sm:$0xff]
  %v19 = vld [vmem:[%s0 + $0x28] sm:$0xff]
  %v20 = vld [vmem:[%s0 + $0x30] sm:$0xff]
  %v21 = vld [vmem:[%s0 + $0x38] sm:$0xff]
  %v22 = vld [vmem:[%s2] sm:$0xff]
  %v23 = vld [vmem:[%s2 + $0x8] sm:$0xf]
  %vm24 = vcmask 97280
  %v26 = vsel %vm24, %v14, 0
  %v29 = vsel %vm24, %v15, 0
  %v32 = vsel %vm24, %v16, 0
  %v35 = vsel %vm24, %v17, 0
  %v38 = vsel %vm24, %v18, 0
  %v41 = vsel %vm24, %v19, 0
  %v44 = vsel %vm24, %v20, 0
  %v47 = vsel %vm24, %v21, 0
  %vm49 = vcmask 1043456
  %v51 = vsel %vm49, %v23, 0
  %53 = vmatprep.subr.mxu0 0.0
  %54 = vmatpush1.msra.mxu0 %v22
  %55 = vmatprep.subr.mxu0 0.0
  %56 = vmatpush1.msra.mxu0 %v51
  %57 = vmatprep.subr.mxu0 0.0
  %58 = vmatpush1.msra.mxu0 0.0
  %59 = vmatprep.subr.mxu0 0.0
  %60 = vmatpush1.msra.mxu0 0.0
  %61 = vmatprep.subr.mxu0 0.0
  %62 = vmatpush1.msra.mxu0 0.0
  %63 = vmatprep.subr.mxu0 0.0
  %64 = vmatpush1.msra.mxu0 0.0
  %65 = vmatprep.subr.mxu0 0.0
  %66 = vmatpush1.msra.mxu0 0.0
  %67 = vmatprep.subr.mxu0 0.0
  %68 = vmatpush1.msra.mxu0 0.0
  %69 = vmatprep.subr.mxu0 0.0
  %70 = vmatpush1.msra.mxu0 0.0
  %71 = vmatprep.subr.mxu0 0.0
  %72 = vmatpush1.msra.mxu0 0.0
  %73 = vmatprep.subr.mxu0 0.0
  %74 = vmatpush1.msra.mxu0 0.0
  %75 = vmatprep.subr.mxu0 0.0
  %76 = vmatpush1.msra.mxu0 0.0
  %77 = vmatprep.subr.mxu0 0.0
  %78 = vmatpush1.msra.mxu0 0.0
  %79 = vmatprep.subr.mxu0 0.0
  %80 = vmatpush1.msra.mxu0 0.0
  %81 = vmatprep.subr.mxu0 0.0
  %82 = vmatpush1.msra.mxu0 0.0
  %83 = vmatprep.subr.mxu0 0.0
  %84 = vmatpush1.msra.mxu0 0.0
  %85 = vmatprep.subr.mxu0 0.0
  %86 = vmatpush1.msra.mxu0 0.0
  %87 = vmatprep.subr.mxu0 0.0
  %88 = vmatpush1.msra.mxu0 0.0
  %89 = vmatprep.subr.mxu0 0.0
  %90 = vmatpush1.msra.mxu0 0.0
  %91 = vmatprep.subr.mxu0 0.0
  %92 = vmatpush1.msra.mxu0 0.0
  %93 = vmatprep.subr.mxu0 0.0
  %94 = vmatpush1.msra.mxu0 0.0
  %95 = vmatprep.subr.mxu0 0.0
  %96 = vmatpush1.msra.mxu0 0.0
  %97 = vmatprep.subr.mxu0 0.0
  %98 = vmatpush1.msra.mxu0 0.0
  %99 = vmatprep.subr.mxu0 0.0
  %100 = vmatpush1.msra.mxu0 0.0
  %101 = vmatprep.subr.mxu0 0.0
  %102 = vmatpush1.msra.mxu0 0.0
  %103 = vmatprep.subr.mxu0 0.0
  %104 = vmatpush1.msra.mxu0 0.0
  %105 = vmatprep.subr.mxu0 0.0
  %106 = vmatpush1.msra.mxu0 0.0
  %107 = vmatprep.subr.mxu0 0.0
  %108 = vmatpush1.msra.mxu0 0.0
  %109 = vmatprep.subr.mxu0 0.0
  %110 = vmatpush1.msra.mxu0 0.0
  %111 = vmatprep.subr.mxu0 0.0
  %112 = vmatpush1.msra.mxu0 0.0
  %113 = vmatprep.subr.mxu0 0.0
  %114 = vmatpush1.msra.mxu0 0.0
  %115 = vmatprep.subr.mxu0 0.0
  %116 = vmatpush1.msra.mxu0 0.0
  %117 = vmatprep.mubr.f32.mxu0 0.0
  %118 = vmatmul.mubr.f32.gmra.mrb[0].mxu0 %v26
  %v119 = vpop.f32.mrb[0].mxu0
  %v120 = vadd.f32 0.0, %v119
  %v121 = vpop.f32.mrb[0].mxu0
  %122 = vmatprep.mubr.f32.mxu0 0.0
  %123 = vmatmul.mubr.f32.gmra.mrb[0].mxu0 %v29
  %v124 = vpop.f32.mrb[0].mxu0
  %v125 = vadd.f32 0.0, %v124
  %v126 = vpop.f32.mrb[0].mxu0
  %127 = vmatprep.mubr.f32.mxu0 0.0
  %128 = vmatmul.mubr.f32.gmra.mrb[0].mxu0 %v32
  %v129 = vpop.f32.mrb[0].mxu0
  %v130 = vadd.f32 0.0, %v129
  %v131 = vpop.f32.mrb[0].mxu0
  %132 = vmatprep.mubr.f32.mxu0 0.0
  %133 = vmatmul.mubr.f32.gmra.mrb[0].mxu0 %v35
  %v134 = vpop.f32.mrb[0].mxu0
  %v135 = vadd.f32 0.0, %v134
  %v136 = vpop.f32.mrb[0].mxu0
  %137 = vmatprep.mubr.f32.mxu0 0.0
  %138 = vmatmul.mubr.f32.gmra.mrb[0].mxu0 %v38
  %v139 = vpop.f32.mrb[0].mxu0
  %v140 = vadd.f32 0.0, %v139
  %v141 = vpop.f32.mrb[0].mxu0
  %142 = vmatprep.mubr.f32.mxu0 0.0
  %143 = vmatmul.mubr.f32.gmra.mrb[0].mxu0 %v41
  %v144 = vpop.f32.mrb[0].mxu0
  %v145 = vadd.f32 0.0, %v144
  %v146 = vpop.f32.mrb[0].mxu0
  %147 = vmatprep.mubr.f32.mxu0 0.0
  %148 = vmatmul.mubr.f32.gmra.mrb[0].mxu0 %v44
  %v149 = vpop.f32.mrb[0].mxu0
  %v150 = vadd.f32 0.0, %v149
  %v151 = vpop.f32.mrb[0].mxu0
  %152 = vmatprep.mubr.f32.mxu0 0.0
  %153 = vmatmul.mubr.f32.gmra.mrb[0].mxu0 %v47
  %v154 = vpop.f32.mrb[0].mxu0
  %v155 = vadd.f32 0.0, %v154
  %v156 = vpop.f32.mrb[0].mxu0
  %157 = vdwg.mxu0
  %v158 = vxor.u32 %v120, 2147483648
  %v159 = vxor.u32 %v125, 2147483648
  %v160 = vxor.u32 %v130, 2147483648
  %v161 = vxor.u32 %v135, 2147483648
  %v162 = vxor.u32 %v140, 2147483648
  %v163 = vxor.u32 %v145, 2147483648
  %v164 = vxor.u32 %v150, 2147483648
  %v165 = vxor.u32 %v155, 2147483648
  %v166 = vmul.f32 %v158, 1.442695
  %v167 = vpow.pop %v166
  %v168 = vmul.f32 %v159, 1.442695
  %v169 = vpow.pop %v168
  %v170 = vmul.f32 %v160, 1.442695
  %v171 = vpow.pop %v170
  %v172 = vmul.f32 %v161, 1.442695
  %v173 = vpow.pop %v172
  %v174 = vmul.f32 %v162, 1.442695
  %v175 = vpow.pop %v174
  %v176 = vmul.f32 %v163, 1.442695
  %v177 = vpow.pop %v176
  %v178 = vmul.f32 %v164, 1.442695
  %v179 = vpow.pop %v178
  %v180 = vmul.f32 %v165, 1.442695
  %v181 = vpow.pop %v180
  %v182 = vadd.f32 %v167, 1.0
  %v183 = vadd.f32 %v169, 1.0
  %v184 = vadd.f32 %v171, 1.0
  %v185 = vadd.f32 %v173, 1.0
  %v186 = vadd.f32 %v175, 1.0
  %v187 = vadd.f32 %v177, 1.0
  %v188 = vadd.f32 %v179, 1.0
  %v189 = vadd.f32 %v181, 1.0
  %v190 = vrcp.pop %v182
  %v191 = vmul.f32 1.0, %v190
  %v192 = vrcp.pop %v183
  %v193 = vmul.f32 1.0, %v192
  %v194 = vrcp.pop %v184
  %v195 = vmul.f32 1.0, %v194
  %v196 = vrcp.pop %v185
  %v197 = vmul.f32 1.0, %v196
  %v198 = vrcp.pop %v186
  %v199 = vmul.f32 1.0, %v198
  %v200 = vrcp.pop %v187
  %v201 = vmul.f32 1.0, %v200
  %v202 = vrcp.pop %v188
  %v203 = vmul.f32 1.0, %v202
  %v204 = vrcp.pop %v189
  %v205 = vmul.f32 1.0, %v204
  %v206 = vmul.f32 %v120, %v191
  %v207 = vmul.f32 %v125, %v193
  %v208 = vmul.f32 %v130, %v195
  %v209 = vmul.f32 %v135, %v197
  %v210 = vmul.f32 %v140, %v199
  %v211 = vmul.f32 %v145, %v201
  %v212 = vmul.f32 %v150, %v203
  %v213 = vmul.f32 %v155, %v205
  %v214 = vld [vmem:[%s1] sm:$0xff]
  %v215 = vld [vmem:[%s1 + $0x8] sm:$0xff]
  %v216 = vld [vmem:[%s1 + $0x10] sm:$0xff]
  %v217 = vld [vmem:[%s1 + $0x18] sm:$0xff]
  %v218 = vld [vmem:[%s1 + $0x20] sm:$0xff]
  %v219 = vld [vmem:[%s1 + $0x28] sm:$0xff]
  %v220 = vld [vmem:[%s1 + $0x30] sm:$0xff]
  %v221 = vld [vmem:[%s1 + $0x38] sm:$0xff]
  %v222 = vmul.f32 %v206, %v214
  %v223 = vmul.f32 %v207, %v215
  %v224 = vmul.f32 %v208, %v216
  %v225 = vmul.f32 %v209, %v217
  %v226 = vmul.f32 %v210, %v218
  %v227 = vmul.f32 %v211, %v219
  %v228 = vmul.f32 %v212, %v220
  %v229 = vmul.f32 %v213, %v221
  %vm230 = vcmask 130048
  %231 = vst.msk [vmem:[%s3] sm:$0xff] %vm230, %v222
  %232 = vst.msk [vmem:[%s3 + $0x8] sm:$0xff] %vm230, %v223
  %233 = vst.msk [vmem:[%s3 + $0x10] sm:$0xff] %vm230, %v224
  %234 = vst.msk [vmem:[%s3 + $0x18] sm:$0xff] %vm230, %v225
  %235 = vst.msk [vmem:[%s3 + $0x20] sm:$0xff] %vm230, %v226
  %236 = vst.msk [vmem:[%s3 + $0x28] sm:$0xff] %vm230, %v227
  %237 = vst.msk [vmem:[%s3 + $0x30] sm:$0xff] %vm230, %v228
  %238 = vst.msk [vmem:[%s3 + $0x38] sm:$0xff] %vm230, %v229
  // Predicated region
  $region14: #{interaction_block.4} parent=0 // pred_check
    _
  $region15: #{interaction_block.4} parent=0 // pred_check_branch
    %240 = sbr.rel (0) target = $region17
  $region16: #{interaction_block.4} parent=0 // pred_region
    _
  $region17: #{interaction_block.4} parent=0 // pred_fallthru
    _
  // Predicated region
  $region18: #{interaction_block.4} parent=0 // pred_check
    _
  $region19: #{interaction_block.4} parent=0 // pred_check_branch
    %242 = sbr.rel (0) target = $region21
  $region20: #{interaction_block.4} parent=0 // pred_region
    _
  $region21: #{interaction_block.4} parent=0 // pred_fallthru
    _

// kernel: interaction_block.3
$region0: #{interaction_block.3}
  #allocation0 [shape = 'u32[]', space=smem, size = 0x4, offset = 0x4, fixed_abs, tag = 'smem constant byte address 0x4 - core index']
  #allocation1 [shape = 'u32[144,128]{1,0:T(1,128)}', space=vmem, size = 0x12000, scoped, tag = 'internal scratch']
  %s0 = inlined_call_operand.vmem [shape: f32[32,32], index: 0, kind: input, shape index: {}]
  %s1 = inlined_call_operand.vmem [shape: f32[32,8], index: 1, kind: input, shape index: {}]
  %s2 = inlined_call_operand.vmem [shape: f32[8,32], index: 2, kind: input, shape index: {}]
  %s3 = inlined_call_operand.vmem [shape: f32[32,32], index: 3, kind: input, shape index: {}]
  %s4 = inlined_call_operand.vmem [shape: f32[1,32], index: 4, kind: input, shape index: {}]
  %s5 = inlined_call_operand.vmem [shape: f32[32,32], index: 5, kind: input, shape index: {}]
  %s6 = inlined_call_operand.vmem [shape: f32[1,32], index: 6, kind: input, shape index: {}]
  %s7 = inlined_call_operand.vmem [shape: f32[32,16], index: 7, kind: input, shape index: {}]
  %s8 = inlined_call_operand.vmem [shape: f32[32,32], index: 8, kind: output, shape index: {0}]
  %s9 = inlined_call_operand.vmem [shape: f32[32,16], index: 9, kind: output, shape index: {1}]
  %10 = xla_tuple %s8, %s9
  %s11 = sld [smem:[#allocation0]]
  $region50: #{interaction_block.3} parent=0
    _
  %s13 = ssub.s32 1, %s11
  %s14 = scalar_select 0, %s13, %s11
  // Predicated region
  $region2: #{interaction_block.3} parent=0 // pred_check
    _
  $region3: #{interaction_block.3} parent=0 // pred_check_branch
    %16 = sbr.rel (0) target = $region5
  $region4: #{interaction_block.3} parent=0 // pred_region
    _
  $region5: #{interaction_block.3} parent=0 // pred_fallthru
    _
  // Predicated region
  $region6: #{interaction_block.3} parent=0 // pred_check
    _
  $region7: #{interaction_block.3} parent=0 // pred_check_branch
    %18 = sbr.rel (0) target = $region9
  $region8: #{interaction_block.3} parent=0 // pred_region
    _
  $region9: #{interaction_block.3} parent=0 // pred_fallthru
    _
  // Predicated region
  $region10: #{interaction_block.3} parent=0 // pred_check
    _
  $region11: #{interaction_block.3} parent=0 // pred_check_branch
    %20 = sbr.rel (0) target = $region13
  $region12: #{interaction_block.3} parent=0 // pred_region
    _
  $region13: #{interaction_block.3} parent=0 // pred_fallthru
    _
  // Predicated region
  $region14: #{interaction_block.3} parent=0 // pred_check
    _
  $region15: #{interaction_block.3} parent=0 // pred_check_branch
    %22 = sbr.rel (0) target = $region17
  $region16: #{interaction_block.3} parent=0 // pred_region
    _
  $region17: #{interaction_block.3} parent=0 // pred_fallthru
    _
  // Predicated region
  $region18: #{interaction_block.3} parent=0 // pred_check
    _
  $region19: #{interaction_block.3} parent=0 // pred_check_branch
    %24 = sbr.rel (0) target = $region21
  $region20: #{interaction_block.3} parent=0 // pred_region
    _
  $region21: #{interaction_block.3} parent=0 // pred_fallthru
    _
  // Predicated region
  $region22: #{interaction_block.3} parent=0 // pred_check
    _
  $region23: #{interaction_block.3} parent=0 // pred_check_branch
    %26 = sbr.rel (0) target = $region25
  $region24: #{interaction_block.3} parent=0 // pred_region
    _
  $region25: #{interaction_block.3} parent=0 // pred_fallthru
    _
  // Predicated region
  $region26: #{interaction_block.3} parent=0 // pred_check
    _
  $region27: #{interaction_block.3} parent=0 // pred_check_branch
    %28 = sbr.rel (0) target = $region29
  $region28: #{interaction_block.3} parent=0 // pred_region
    _
  $region29: #{interaction_block.3} parent=0 // pred_fallthru
    _
  // Predicated region
  $region30: #{interaction_block.3} parent=0 // pred_check
    _
  $region31: #{interaction_block.3} parent=0 // pred_check_branch
    %30 = sbr.rel (0) target = $region33
  $region32: #{interaction_block.3} parent=0 // pred_region
    _
  $region33: #{interaction_block.3} parent=0 // pred_fallthru
    _
  %v31 = vld [vmem:[%s0] sm:$0xff]
  %v32 = vld [vmem:[%s0 + $0x8] sm:$0xff]
  %v33 = vld [vmem:[%s0 + $0x10] sm:$0xff]
  %v34 = vld [vmem:[%s0 + $0x18] sm:$0xff]
  %v35 = vld [vmem:[%s1] sm:$0xff]
  %v36 = vld [vmem:[%s1 + $0x8] sm:$0xff]
  %v37 = vld [vmem:[%s1 + $0x10] sm:$0xff]
  %v38 = vld [vmem:[%s1 + $0x18] sm:$0xff]
  %v39 = vld [vmem:[%s2] sm:$0xff]
  %vm40 = vcmask 64512
  %v42 = vsel %vm40, %v35, 0
  %v45 = vsel %vm40, %v36, 0
  %v48 = vsel %vm40, %v37, 0
  %v51 = vsel %vm40, %v38, 0
  %53 = vmatprep.subr.mxu0 0.0
  %54 = vmatpush1.msra.mxu0 %v39
  %55 = vmatprep.subr.mxu0 0.0
  %56 = vmatpush1.msra.mxu0 0.0
  %57 = vmatprep.subr.mxu0 0.0
  %58 = vmatpush1.msra.mxu0 0.0
  %59 = vmatprep.subr.mxu0 0.0
  %60 = vmatpush1.msra.mxu0 0.0
  %61 = vmatprep.subr.mxu0 0.0
  %62 = vmatpush1.msra.mxu0 0.0
  %63 = vmatprep.subr.mxu0 0.0
  %64 = vmatpush1.msra.mxu0 0.0
  %65 = vmatprep.subr.mxu0 0.0
  %66 = vmatpush1.msra.mxu0 0.0
  %67 = vmatprep.subr.mxu0 0.0
  %68 = vmatpush1.msra.mxu0 0.0
  %69 = vmatprep.subr.mxu0 0.0
  %70 = vmatpush1.msra.mxu0 0.0
  %71 = vmatprep.subr.mxu0 0.0
  %72 = vmatpush1.msra.mxu0 0.0
  %73 = vmatprep.subr.mxu0 0.0
  %74 = vmatpush1.msra.mxu0 0.0
  %75 = vmatprep.subr.mxu0 0.0
  %76 = vmatpush1.msra.mxu0 0.0
  %77 = vmatprep.subr.mxu0 0.0
  %78 = vmatpush1.msra.mxu0 0.0
  %79 = vmatprep.subr.mxu0 0.0
  %80 = vmatpush1.msra.mxu0 0.0
  %81 = vmatprep.subr.mxu0 0.0
  %82 = vmatpush1.msra.mxu0 0.0
  %83 = vmatprep.subr.mxu0 0.0
  %84 = vmatpush1.msra.mxu0 0.0
  %85 = vmatprep.subr.mxu0 0.0
  %86 = vmatpush1.msra.mxu0 0.0
  %87 = vmatprep.subr.mxu0 0.0
  %88 = vmatpush1.msra.mxu0 0.0
  %89 = vmatprep.subr.mxu0 0.0
  %90 = vmatpush1.msra.mxu0 0.0
  %91 = vmatprep.subr.mxu0 0.0
  %92 = vmatpush1.msra.mxu0 0.0
  %93 = vmatprep.subr.mxu0 0.0
  %94 = vmatpush1.msra.mxu0 0.0
  %95 = vmatprep.subr.mxu0 0.0
  %96 = vmatpush1.msra.mxu0 0.0
  %97 = vmatprep.subr.mxu0 0.0
  %98 = vmatpush1.msra.mxu0 0.0
  %99 = vmatprep.subr.mxu0 0.0
  %100 = vmatpush1.msra.mxu0 0.0
  %101 = vmatprep.subr.mxu0 0.0
  %102 = vmatpush1.msra.mxu0 0.0
  %103 = vmatprep.subr.mxu0 0.0
  %104 = vmatpush1.msra.mxu0 0.0
  %105 = vmatprep.subr.mxu0 0.0
  %106 = vmatpush1.msra.mxu0 0.0
  %107 = vmatprep.subr.mxu0 0.0
  %108 = vmatpush1.msra.mxu0 0.0
  %109 = vmatprep.subr.mxu0 0.0
  %110 = vmatpush1.msra.mxu0 0.0
  %111 = vmatprep.subr.mxu0 0.0
  %112 = vmatpush1.msra.mxu0 0.0
  %113 = vmatprep.subr.mxu0 0.0
  %114 = vmatpush1.msra.mxu0 0.0
  %115 = vmatprep.subr.mxu0 0.0
  %116 = vmatpush1.msra.mxu0 0.0
  %117 = vmatprep.mubr.f32.mxu0 0.0
  %118 = vmatmul.mubr.f32.gmra.mrb[0].mxu0 %v42
  %v119 = vpop.f32.mrb[0].mxu0
  %v120 = vadd.f32 0.0, %v119
  %v121 = vpop.f32.mrb[0].mxu0
  %122 = vmatprep.mubr.f32.mxu0 0.0
  %123 = vmatmul.mubr.f32.gmra.mrb[0].mxu0 %v45
  %v124 = vpop.f32.mrb[0].mxu0
  %v125 = vadd.f32 0.0, %v124
  %v126 = vpop.f32.mrb[0].mxu0
  %127 = vmatprep.mubr.f32.mxu0 0.0
  %128 = vmatmul.mubr.f32.gmra.mrb[0].mxu0 %v48
  %v129 = vpop.f32.mrb[0].mxu0
  %v130 = vadd.f32 0.0, %v129
  %v131 = vpop.f32.mrb[0].mxu0
  %132 = vmatprep.mubr.f32.mxu0 0.0
  %133 = vmatmul.mubr.f32.gmra.mrb[0].mxu0 %v51
  %v134 = vpop.f32.mrb[0].mxu0
  %v135 = vadd.f32 0.0, %v134
  %v136 = vpop.f32.mrb[0].mxu0
  %137 = vdwg.mxu0
  %v138 = vxor.u32 %v120, 2147483648
  %v139 = vxor.u32 %v125, 2147483648
  %v140 = vxor.u32 %v130, 2147483648
  %v141 = vxor.u32 %v135, 2147483648
  %v142 = vmul.f32 %v138, 1.442695
  %v143 = vpow.pop %v142
  %v144 = vmul.f32 %v139, 1.442695
  %v145 = vpow.pop %v144
  %v146 = vmul.f32 %v140, 1.442695
  %v147 = vpow.pop %v146
  %v148 = vmul.f32 %v141, 1.442695
  %v149 = vpow.pop %v148
  %v150 = vadd.f32 %v143, 1.0
  %v151 = vadd.f32 %v145, 1.0
  %v152 = vadd.f32 %v147, 1.0
  %v153 = vadd.f32 %v149, 1.0
  %v154 = vrcp.pop %v150
  %v155 = vmul.f32 1.0, %v154
  %v156 = vrcp.pop %v151
  %v157 = vmul.f32 1.0, %v156
  %v158 = vrcp.pop %v152
  %v159 = vmul.f32 1.0, %v158
  %v160 = vrcp.pop %v153
  %v161 = vmul.f32 1.0, %v160
  %v162 = vmul.f32 %v120, %v155
  %v163 = vmul.f32 %v125, %v157
  %v164 = vmul.f32 %v130, %v159
  %v165 = vmul.f32 %v135, %v161
  %v166 = vld [vmem:[%s3] sm:$0xff]
  %v167 = vld [vmem:[%s3 + $0x8] sm:$0xff]
  %v168 = vld [vmem:[%s3 + $0x10] sm:$0xff]
  %v169 = vld [vmem:[%s3 + $0x18] sm:$0xff]
  %v170 = vld [vmem:[%s4] sm:$0x1]
  %v172 = vlaneseq
  %v173 = vshrl.u32 %v172, 7
  %v174 = vsub.s32 0, %v173
  %v175 = vrot.slane %v170, %v174
  %vm177 = vcmask 261120
  %v179 = vsel %vm177, %v31, 0
  %v182 = vsel %vm177, %v32, 0
  %v185 = vsel %vm177, %v33, 0
  %v188 = vsel %vm177, %v34, 0
  %190 = vmatprep.subr.mxu0 0.0
  %191 = vmatpush1.msra.mxu0 %v166
  %192 = vmatprep.subr.mxu0 0.0
  %193 = vmatpush1.msra.mxu0 %v167
  %194 = vmatprep.subr.mxu0 0.0
  %195 = vmatpush1.msra.mxu0 %v168
  %196 = vmatprep.subr.mxu0 0.0
  %197 = vmatpush1.msra.mxu0 %v169
  %198 = vmatprep.subr.mxu0 0.0
  %199 = vmatpush1.msra.mxu0 0.0
  %200 = vmatprep.subr.mxu0 0.0
  %201 = vmatpush1.msra.mxu0 0.0
  %202 = vmatprep.subr.mxu0 0.0
  %203 = vmatpush1.msra.mxu0 0.0
  %204 = vmatprep.subr.mxu0 0.0
  %205 = vmatpush1.msra.mxu0 0.0
  %206 = vmatprep.subr.mxu0 0.0
  %207 = vmatpush1.msra.mxu0 0.0
  %208 = vmatprep.subr.mxu0 0.0
  %209 = vmatpush1.msra.mxu0 0.0
  %210 = vmatprep.subr.mxu0 0.0
  %211 = vmatpush1.msra.mxu0 0.0
  %212 = vmatprep.subr.mxu0 0.0
  %213 = vmatpush1.msra.mxu0 0.0
  %214 = vmatprep.subr.mxu0 0.0
  %215 = vmatpush1.msra.mxu0 0.0
  %216 = vmatprep.subr.mxu0 0.0
  %217 = vmatpush1.msra.mxu0 0.0
  %218 = vmatprep.subr.mxu0 0.0
  %219 = vmatpush1.msra.mxu0 0.0
  %220 = vmatprep.subr.mxu0 0.0
  %221 = vmatpush1.msra.mxu0 0.0
  %222 = vmatprep.subr.mxu0 0.0
  %223 = vmatpush1.msra.mxu0 0.0
  %224 = vmatprep.subr.mxu0 0.0
  %225 = vmatpush1.msra.mxu0 0.0
  %226 = vmatprep.subr.mxu0 0.0
  %227 = vmatpush1.msra.mxu0 0.0
  %228 = vmatprep.subr.mxu0 0.0
  %229 = vmatpush1.msra.mxu0 0.0
  %230 = vmatprep.subr.mxu0 0.0
  %231 = vmatpush1.msra.mxu0 0.0
  %232 = vmatprep.subr.mxu0 0.0
  %233 = vmatpush1.msra.mxu0 0.0
  %234 = vmatprep.subr.mxu0 0.0
  %235 = vmatpush1.msra.mxu0 0.0
  %236 = vmatprep.subr.mxu0 0.0
  %237 = vmatpush1.msra.mxu0 0.0
  %238 = vmatprep.subr.mxu0 0.0
  %239 = vmatpush1.msra.mxu0 0.0
  %240 = vmatprep.subr.mxu0 0.0
  %241 = vmatpush1.msra.mxu0 0.0
  %242 = vmatprep.subr.mxu0 0.0
  %243 = vmatpush1.msra.mxu0 0.0
  %244 = vmatprep.subr.mxu0 0.0
  %245 = vmatpush1.msra.mxu0 0.0
  %246 = vmatprep.subr.mxu0 0.0
  %247 = vmatpush1.msra.mxu0 0.0
  %248 = vmatprep.subr.mxu0 0.0
  %249 = vmatpush1.msra.mxu0 0.0
  %250 = vmatprep.subr.mxu0 0.0
  %251 = vmatpush1.msra.mxu0 0.0
  %252 = vmatprep.subr.mxu0 0.0
  %253 = vmatpush1.msra.mxu0 0.0
  %254 = vmatprep.mubr.f32.mxu0 0.0
  %255 = vmatmul.mubr.f32.gmra.mrb[0].mxu0 %v179
  %v256 = vpop.f32.mrb[0].mxu0
  %v257 = vadd.f32 %v175, %v256
  %v258 = vpop.f32.mrb[0].mxu0
  %259 = vmatprep.mubr.f32.mxu0 0.0
  %260 = vmatmul.mubr.f32.gmra.mrb[0].mxu0 %v182
  %v261 = vpop.f32.mrb[0].mxu0
  %v262 = vadd.f32 %v175, %v261
  %v263 = vpop.f32.mrb[0].mxu0
  %264 = vmatprep.mubr.f32.mxu0 0.0
  %265 = vmatmul.mubr.f32.gmra.mrb[0].mxu0 %v185
  %v266 = vpop.f32.mrb[0].mxu0
  %v267 = vadd.f32 %v175, %v266
  %v268 = vpop.f32.mrb[0].mxu0
  %269 = vmatprep.mubr.f32.mxu0 0.0
  %270 = vmatmul.mubr.f32.gmra.mrb[0].mxu0 %v188
  %v271 = vpop.f32.mrb[0].mxu0
  %v272 = vadd.f32 %v175, %v271
  %v273 = vpop.f32.mrb[0].mxu0
  %274 = vdwg.mxu0
  %v275 = vxor.u32 %v257, 2147483648
  %v276 = vxor.u32 %v262, 2147483648
  %v277 = vxor.u32 %v267, 2147483648
  %v278 = vxor.u32 %v272, 2147483648
  %v279 = vmul.f32 %v275, 1.442695
  %v280 = vpow.pop %v279
  %v281 = vmul.f32 %v276, 1.442695
  %v282 = vpow.pop %v281
  %v283 = vmul.f32 %v277, 1.442695
  %v284 = vpow.pop %v283
  %v285 = vmul.f32 %v278, 1.442695
  %v286 = vpow.pop %v285
  %v287 = vadd.f32 %v280, 1.0
  %v288 = vadd.f32 %v282, 1.0
  %v289 = vadd.f32 %v284, 1.0
  %v290 = vadd.f32 %v286, 1.0
  %v291 = vrcp.pop %v287
  %v292 = vmul.f32 1.0, %v291
  %v293 = vrcp.pop %v288
  %v294 = vmul.f32 1.0, %v293
  %v295 = vrcp.pop %v289
  %v296 = vmul.f32 1.0, %v295
  %v297 = vrcp.pop %v290
  %v298 = vmul.f32 1.0, %v297
  %v299 = vmul.f32 %v257, %v292
  %v300 = vmul.f32 %v262, %v294
  %v301 = vmul.f32 %v267, %v296
  %v302 = vmul.f32 %v272, %v298
  %v303 = vld [vmem:[%s5] sm:$0xff]
  %v304 = vld [vmem:[%s5 + $0x8] sm:$0xff]
  %v305 = vld [vmem:[%s5 + $0x10] sm:$0xff]
  %v306 = vld [vmem:[%s5 + $0x18] sm:$0xff]
  %v307 = vld [vmem:[%s6] sm:$0x1]
  %v309 = vlaneseq
  %v310 = vshrl.u32 %v309, 7
  %v311 = vsub.s32 0, %v310
  %v312 = vrot.slane %v307, %v311
  %314 = vmatprep.subr.mxu0 0.0
  %315 = vmatpush1.msra.mxu0 %v303
  %316 = vmatprep.subr.mxu0 0.0
  %317 = vmatpush1.msra.mxu0 %v304
  %318 = vmatprep.subr.mxu0 0.0
  %319 = vmatpush1.msra.mxu0 %v305
  %320 = vmatprep.subr.mxu0 0.0
  %321 = vmatpush1.msra.mxu0 %v306
  %322 = vmatprep.subr.mxu0 0.0
  %323 = vmatpush1.msra.mxu0 0.0
  %324 = vmatprep.subr.mxu0 0.0
  %325 = vmatpush1.msra.mxu0 0.0
  %326 = vmatprep.subr.mxu0 0.0
  %327 = vmatpush1.msra.mxu0 0.0
  %328 = vmatprep.subr.mxu0 0.0
  %329 = vmatpush1.msra.mxu0 0.0
  %330 = vmatprep.subr.mxu0 0.0
  %331 = vmatpush1.msra.mxu0 0.0
  %332 = vmatprep.subr.mxu0 0.0
  %333 = vmatpush1.msra.mxu0 0.0
  %334 = vmatprep.subr.mxu0 0.0
  %335 = vmatpush1.msra.mxu0 0.0
  %336 = vmatprep.subr.mxu0 0.0
  %337 = vmatpush1.msra.mxu0 0.0
  %338 = vmatprep.subr.mxu0 0.0
  %339 = vmatpush1.msra.mxu0 0.0
  %340 = vmatprep.subr.mxu0 0.0
  %341 = vmatpush1.msra.mxu0 0.0
  %342 = vmatprep.subr.mxu0 0.0
  %343 = vmatpush1.msra.mxu0 0.0
  %344 = vmatprep.subr.mxu0 0.0
  %345 = vmatpush1.msra.mxu0 0.0
  %346 = vmatprep.subr.mxu0 0.0
  %347 = vmatpush1.msra.mxu0 0.0
  %348 = vmatprep.subr.mxu0 0.0
  %349 = vmatpush1.msra.mxu0 0.0
  %350 = vmatprep.subr.mxu0 0.0
  %351 = vmatpush1.msra.mxu0 0.0
  %352 = vmatprep.subr.mxu0 0.0
  %353 = vmatpush1.msra.mxu0 0.0
  %354 = vmatprep.subr.mxu0 0.0
  %355 = vmatpush1.msra.mxu0 0.0
  %356 = vmatprep.subr.mxu0 0.0
  %357 = vmatpush1.msra.mxu0 0.0
  %358 = vmatprep.subr.mxu0 0.0
  %359 = vmatpush1.msra.mxu0 0.0
  %360 = vmatprep.subr.mxu0 0.0
  %361 = vmatpush1.msra.mxu0 0.0
  %362 = vmatprep.subr.mxu0 0.0
  %363 = vmatpush1.msra.mxu0 0.0
  %364 = vmatprep.subr.mxu0 0.0
  %365 = vmatpush1.msra.mxu0 0.0
  %366 = vmatprep.subr.mxu0 0.0
  %367 = vmatpush1.msra.mxu0 0.0
  %368 = vmatprep.subr.mxu0 0.0
  %369 = vmatpush1.msra.mxu0 0.0
  %370 = vmatprep.subr.mxu0 0.0
  %371 = vmatpush1.msra.mxu0 0.0
  %372 = vmatprep.subr.mxu0 0.0
  %373 = vmatpush1.msra.mxu0 0.0
  %374 = vmatprep.subr.mxu0 0.0
  %375 = vmatpush1.msra.mxu0 0.0
  %376 = vmatprep.subr.mxu0 0.0
  %377 = vmatpush1.msra.mxu0 0.0
  %378 = vmatprep.mubr.f32.mxu0 0.0
  %379 = vmatmul.mubr.f32.gmra.mrb[0].mxu0 %v179
  %v380 = vpop.f32.mrb[0].mxu0
  %v381 = vadd.f32 %v312, %v380
  %v382 = vpop.f32.mrb[0].mxu0
  %383 = vmatprep.mubr.f32.mxu0 0.0
  %384 = vmatmul.mubr.f32.gmra.mrb[0].mxu0 %v182
  %v385 = vpop.f32.mrb[0].mxu0
  %v386 = vadd.f32 %v312, %v385
  %v387 = vpop.f32.mrb[0].mxu0
  %388 = vmatprep.mubr.f32.mxu0 0.0
  %389 = vmatmul.mubr.f32.gmra.mrb[0].mxu0 %v185
  %v390 = vpop.f32.mrb[0].mxu0
  %v391 = vadd.f32 %v312, %v390
  %v392 = vpop.f32.mrb[0].mxu0
  %393 = vmatprep.mubr.f32.mxu0 0.0
  %394 = vmatmul.mubr.f32.gmra.mrb[0].mxu0 %v188
  %v395 = vpop.f32.mrb[0].mxu0
  %v396 = vadd.f32 %v312, %v395
  %v397 = vpop.f32.mrb[0].mxu0
  %398 = vdwg.mxu0
  %v399 = vxor.u32 %v381, 2147483648
  %v400 = vxor.u32 %v386, 2147483648
  %v401 = vxor.u32 %v391, 2147483648
  %v402 = vxor.u32 %v396, 2147483648
  %v403 = vmul.f32 %v399, 1.442695
  %v404 = vpow.pop %v403
  %v405 = vmul.f32 %v400, 1.442695
  %v406 = vpow.pop %v405
  %v407 = vmul.f32 %v401, 1.442695
  %v408 = vpow.pop %v407
  %v409 = vmul.f32 %v402, 1.442695
  %v410 = vpow.pop %v409
  %v411 = vadd.f32 %v404, 1.0
  %v412 = vadd.f32 %v406, 1.0
  %v413 = vadd.f32 %v408, 1.0
  %v414 = vadd.f32 %v410, 1.0
  %v415 = vrcp.pop %v411
  %v416 = vmul.f32 1.0, %v415
  %v417 = vrcp.pop %v412
  %v418 = vmul.f32 1.0, %v417
  %v419 = vrcp.pop %v413
  %v420 = vmul.f32 1.0, %v419
  %v421 = vrcp.pop %v414
  %v422 = vmul.f32 1.0, %v421
  %v423 = vmul.f32 %v381, %v416
  %v424 = vmul.f32 %v386, %v418
  %v425 = vmul.f32 %v391, %v420
  %v426 = vmul.f32 %v396, %v422
  %v427 = vmul.f32 %v423, %v162
  %v428 = vmul.f32 %v424, %v163
  %v429 = vmul.f32 %v425, %v164
  %v430 = vmul.f32 %v426, %v165
  %v431 = vld [vmem:[%s7] sm:$0xff]
  %v432 = vld [vmem:[%s7 + $0x8] sm:$0xff]
  %v433 = vld [vmem:[%s7 + $0x10] sm:$0xff]
  %v434 = vld [vmem:[%s7 + $0x18] sm:$0xff]
  %v436 = vsel %vm177, %v427, 0
  %v439 = vsel %vm177, %v428, 0
  %v442 = vsel %vm177, %v429, 0
  %v445 = vsel %vm177, %v430, 0
  %447 = vmatprep.subr.mxu0 0.0
  %448 = vmatpush1.msra.mxu0 %v431
  %449 = vmatprep.subr.mxu0 0.0
  %450 = vmatpush1.msra.mxu0 %v432
  %451 = vmatprep.subr.mxu0 0.0
  %452 = vmatpush1.msra.mxu0 %v433
  %453 = vmatprep.subr.mxu0 0.0
  %454 = vmatpush1.msra.mxu0 %v434
  %455 = vmatprep.subr.mxu0 0.0
  %456 = vmatpush1.msra.mxu0 0.0
  %457 = vmatprep.subr.mxu0 0.0
  %458 = vmatpush1.msra.mxu0 0.0
  %459 = vmatprep.subr.mxu0 0.0
  %460 = vmatpush1.msra.mxu0 0.0
  %461 = vmatprep.subr.mxu0 0.0
  %462 = vmatpush1.msra.mxu0 0.0
  %463 = vmatprep.subr.mxu0 0.0
  %464 = vmatpush1.msra.mxu0 0.0
  %465 = vmatprep.subr.mxu0 0.0
  %466 = vmatpush1.msra.mxu0 0.0
  %467 = vmatprep.subr.mxu0 0.0
  %468 = vmatpush1.msra.mxu0 0.0
  %469 = vmatprep.subr.mxu0 0.0
  %470 = vmatpush1.msra.mxu0 0.0
  %471 = vmatprep.subr.mxu0 0.0
  %472 = vmatpush1.msra.mxu0 0.0
  %473 = vmatprep.subr.mxu0 0.0
  %474 = vmatpush1.msra.mxu0 0.0
  %475 = vmatprep.subr.mxu0 0.0
  %476 = vmatpush1.msra.mxu0 0.0
  %477 = vmatprep.subr.mxu0 0.0
  %478 = vmatpush1.msra.mxu0 0.0
  %479 = vmatprep.subr.mxu0 0.0
  %480 = vmatpush1.msra.mxu0 0.0
  %481 = vmatprep.subr.mxu0 0.0
  %482 = vmatpush1.msra.mxu0 0.0
  %483 = vmatprep.subr.mxu0 0.0
  %484 = vmatpush1.msra.mxu0 0.0
  %485 = vmatprep.subr.mxu0 0.0
  %486 = vmatpush1.msra.mxu0 0.0
  %487 = vmatprep.subr.mxu0 0.0
  %488 = vmatpush1.msra.mxu0 0.0
  %489 = vmatprep.subr.mxu0 0.0
  %490 = vmatpush1.msra.mxu0 0.0
  %491 = vmatprep.subr.mxu0 0.0
  %492 = vmatpush1.msra.mxu0 0.0
  %493 = vmatprep.subr.mxu0 0.0
  %494 = vmatpush1.msra.mxu0 0.0
  %495 = vmatprep.subr.mxu0 0.0
  %496 = vmatpush1.msra.mxu0 0.0
  %497 = vmatprep.subr.mxu0 0.0
  %498 = vmatpush1.msra.mxu0 0.0
  %499 = vmatprep.subr.mxu0 0.0
  %500 = vmatpush1.msra.mxu0 0.0
  %501 = vmatprep.subr.mxu0 0.0
  %502 = vmatpush1.msra.mxu0 0.0
  %503 = vmatprep.subr.mxu0 0.0
  %504 = vmatpush1.msra.mxu0 0.0
  %505 = vmatprep.subr.mxu0 0.0
  %506 = vmatpush1.msra.mxu0 0.0
  %507 = vmatprep.subr.mxu0 0.0
  %508 = vmatpush1.msra.mxu0 0.0
  %509 = vmatprep.subr.mxu0 0.0
  %510 = vmatpush1.msra.mxu0 0.0
  %511 = vmatprep.mubr.f32.mxu0 0.0
  %512 = vmatmul.mubr.f32.gmra.mrb[0].mxu0 %v436
  %v513 = vpop.f32.mrb[0].mxu0
  %v514 = vadd.f32 0.0, %v513
  %v515 = vpop.f32.mrb[0].mxu0
  %516 = vmatprep.mubr.f32.mxu0 0.0
  %517 = vmatmul.mubr.f32.gmra.mrb[0].mxu0 %v439
  %v518 = vpop.f32.mrb[0].mxu0
  %v519 = vadd.f32 0.0, %v518
  %v520 = vpop.f32.mrb[0].mxu0
  %521 = vmatprep.mubr.f32.mxu0 0.0
  %522 = vmatmul.mubr.f32.gmra.mrb[0].mxu0 %v442
  %v523 = vpop.f32.mrb[0].mxu0
  %v524 = vadd.f32 0.0, %v523
  %v525 = vpop.f32.mrb[0].mxu0
  %526 = vmatprep.mubr.f32.mxu0 0.0
  %527 = vmatmul.mubr.f32.gmra.mrb[0].mxu0 %v445
  %v528 = vpop.f32.mrb[0].mxu0
  %v529 = vadd.f32 0.0, %v528
  %v530 = vpop.f32.mrb[0].mxu0
  %531 = vdwg.mxu0
  %v532 = vxor.u32 %v514, 2147483648
  %v533 = vxor.u32 %v519, 2147483648
  %v534 = vxor.u32 %v524, 2147483648
  %v535 = vxor.u32 %v529, 2147483648
  %v536 = vmul.f32 %v532, 1.442695
  %v537 = vpow.pop %v536
  %v538 = vmul.f32 %v533, 1.442695
  %v539 = vpow.pop %v538
  %v540 = vmul.f32 %v534, 1.442695
  %v541 = vpow.pop %v540
  %v542 = vmul.f32 %v535, 1.442695
  %v543 = vpow.pop %v542
  %v544 = vadd.f32 %v537, 1.0
  %v545 = vadd.f32 %v539, 1.0
  %v546 = vadd.f32 %v541, 1.0
  %v547 = vadd.f32 %v543, 1.0
  %v548 = vrcp.pop %v544
  %v549 = vmul.f32 1.0, %v548
  %v550 = vrcp.pop %v545
  %v551 = vmul.f32 1.0, %v550
  %v552 = vrcp.pop %v546
  %v553 = vmul.f32 1.0, %v552
  %v554 = vrcp.pop %v547
  %v555 = vmul.f32 1.0, %v554
  %v556 = vmul.f32 %v514, %v549
  %v557 = vmul.f32 %v519, %v551
  %v558 = vmul.f32 %v524, %v553
  %v559 = vmul.f32 %v529, %v555
  %560 = vst.msk [vmem:[%s8] sm:$0xff] %vm177, %v299
  %561 = vst.msk [vmem:[%s8 + $0x8] sm:$0xff] %vm177, %v300
  %562 = vst.msk [vmem:[%s8 + $0x10] sm:$0xff] %vm177, %v301
  %563 = vst.msk [vmem:[%s8 + $0x18] sm:$0xff] %vm177, %v302
  %vm564 = vcmask 130048
  %565 = vst.msk [vmem:[%s9] sm:$0xff] %vm564, %v556
  %566 = vst.msk [vmem:[%s9 + $0x8] sm:$0xff] %vm564, %v557
  %567 = vst.msk [vmem:[%s9 + $0x10] sm:$0xff] %vm564, %v558
  %568 = vst.msk [vmem:[%s9 + $0x18] sm:$0xff] %vm564, %v559
  // Predicated region
  $region34: #{interaction_block.3} parent=0 // pred_check
    _
  $region35: #{interaction_block.3} parent=0 // pred_check_branch
    %570 = sbr.rel (0) target = $region37
  $region36: #{interaction_block.3} parent=0 // pred_region
    _
  $region37: #{interaction_block.3} parent=0 // pred_fallthru
    _
  // Predicated region
  $region38: #{interaction_block.3} parent=0 // pred_check
    _
  $region39: #{interaction_block.3} parent=0 // pred_check_branch
    %572 = sbr.rel (0) target = $region41
  $region40: #{interaction_block.3} parent=0 // pred_region
    _
  $region41: #{interaction_block.3} parent=0 // pred_fallthru
    _
  // Predicated region
  $region42: #{interaction_block.3} parent=0 // pred_check
    _
  $region43: #{interaction_block.3} parent=0 // pred_check_branch
    %574 = sbr.rel (0) target = $region45
  $region44: #{interaction_block.3} parent=0 // pred_region
    _
  $region45: #{interaction_block.3} parent=0 // pred_fallthru
    _
  // Predicated region
  $region46: #{interaction_block.3} parent=0 // pred_check
    _
  $region47: #{interaction_block.3} parent=0 // pred_check_branch
    %576 = sbr.rel (0) target = $region49
  $region48: #{interaction_block.3} parent=0 // pred_region
    _
  $region49: #{interaction_block.3} parent=0 // pred_fallthru
    _

// kernel: interaction_block.5
$region0: #{interaction_block.5}
  #allocation0 [shape = 'u32[]', space=smem, size = 0x4, offset = 0x4, fixed_abs, tag = 'smem constant byte address 0x4 - core index']
  #allocation1 [shape = 'u32[144,128]{1,0:T(1,128)}', space=vmem, size = 0x12000, scoped, tag = 'internal scratch']
  %s0 = inlined_call_operand.vmem [shape: f32[32,16], index: 0, kind: input, shape index: {}]
  %s1 = inlined_call_operand.vmem [shape: f32[32,32], index: 1, kind: input, shape index: {}]
  %s2 = inlined_call_operand.vmem [shape: f32[32,32], index: 2, kind: input, shape index: {}]
  %s3 = inlined_call_operand.vmem [shape: f32[16,32], index: 3, kind: input, shape index: {}]
  %s4 = inlined_call_operand.vmem [shape: f32[1,32,32], index: 4, kind: input, shape index: {}]
  %s5 = inlined_call_operand.vmem [shape: f32[1,1,32], index: 5, kind: input, shape index: {}]
  %s6 = inlined_call_operand.vmem [shape: f32[1,32,32], index: 6, kind: input, shape index: {}]
  %s7 = inlined_call_operand.vmem [shape: f32[1,1,32], index: 7, kind: input, shape index: {}]
  %s8 = inlined_call_operand.vmem [shape: f32[2,32,32], index: 8, kind: input, shape index: {}]
  %s9 = inlined_call_operand.vmem [shape: f32[2,1,32], index: 9, kind: input, shape index: {}]
  %s10 = inlined_call_operand.vmem [shape: f32[2,32,32], index: 10, kind: input, shape index: {}]
  %s11 = inlined_call_operand.vmem [shape: f32[2,1,32], index: 11, kind: input, shape index: {}]
  %s12 = inlined_call_operand.vmem [shape: f32[32,32], index: 12, kind: output, shape index: {}]
  %s13 = sld [smem:[#allocation0]]
  $region58: #{interaction_block.5} parent=0
    _
  %s15 = ssub.s32 1, %s13
  %s16 = scalar_select 0, %s15, %s13
  // Predicated region
  $region2: #{interaction_block.5} parent=0 // pred_check
    _
  $region3: #{interaction_block.5} parent=0 // pred_check_branch
    %18 = sbr.rel (0) target = $region5
  $region4: #{interaction_block.5} parent=0 // pred_region
    _
  $region5: #{interaction_block.5} parent=0 // pred_fallthru
    _
  // Predicated region
  $region6: #{interaction_block.5} parent=0 // pred_check
    _
  $region7: #{interaction_block.5} parent=0 // pred_check_branch
    %20 = sbr.rel (0) target = $region9
  $region8: #{interaction_block.5} parent=0 // pred_region
    _
  $region9: #{interaction_block.5} parent=0 // pred_fallthru
    _
  // Predicated region
  $region10: #{interaction_block.5} parent=0 // pred_check
    _
  $region11: #{interaction_block.5} parent=0 // pred_check_branch
    %22 = sbr.rel (0) target = $region13
  $region12: #{interaction_block.5} parent=0 // pred_region
    _
  $region13: #{interaction_block.5} parent=0 // pred_fallthru
    _
  // Predicated region
  $region14: #{interaction_block.5} parent=0 // pred_check
    _
  $region15: #{interaction_block.5} parent=0 // pred_check_branch
    %24 = sbr.rel (0) target = $region17
  $region16: #{interaction_block.5} parent=0 // pred_region
    _
  $region17: #{interaction_block.5} parent=0 // pred_fallthru
    _
  // Predicated region
  $region18: #{interaction_block.5} parent=0 // pred_check
    _
  $region19: #{interaction_block.5} parent=0 // pred_check_branch
    %26 = sbr.rel (0) target = $region21
  $region20: #{interaction_block.5} parent=0 // pred_region
    _
  $region21: #{interaction_block.5} parent=0 // pred_fallthru
    _
  // Predicated region
  $region22: #{interaction_block.5} parent=0 // pred_check
    _
  $region23: #{interaction_block.5} parent=0 // pred_check_branch
    %28 = sbr.rel (0) target = $region25
  $region24: #{interaction_block.5} parent=0 // pred_region
    _
  $region25: #{interaction_block.5} parent=0 // pred_fallthru
    _
  // Predicated region
  $region26: #{interaction_block.5} parent=0 // pred_check
    _
  $region27: #{interaction_block.5} parent=0 // pred_check_branch
    %30 = sbr.rel (0) target = $region29
  $region28: #{interaction_block.5} parent=0 // pred_region
    _
  $region29: #{interaction_block.5} parent=0 // pred_fallthru
    _
  // Predicated region
  $region30: #{interaction_block.5} parent=0 // pred_check
    _
  $region31: #{interaction_block.5} parent=0 // pred_check_branch
    %32 = sbr.rel (0) target = $region33
  $region32: #{interaction_block.5} parent=0 // pred_region
    _
  $region33: #{interaction_block.5} parent=0 // pred_fallthru
    _
  // Predicated region
  $region34: #{interaction_block.5} parent=0 // pred_check
    _
  $region35: #{interaction_block.5} parent=0 // pred_check_branch
    %34 = sbr.rel (0) target = $region37
  $region36: #{interaction_block.5} parent=0 // pred_region
    _
  $region37: #{interaction_block.5} parent=0 // pred_fallthru
    _
  // Predicated region
  $region38: #{interaction_block.5} parent=0 // pred_check
    _
  $region39: #{interaction_block.5} parent=0 // pred_check_branch
    %36 = sbr.rel (0) target = $region41
  $region40: #{interaction_block.5} parent=0 // pred_region
    _
  $region41: #{interaction_block.5} parent=0 // pred_fallthru
    _
  // Predicated region
  $region42: #{interaction_block.5} parent=0 // pred_check
    _
  $region43: #{interaction_block.5} parent=0 // pred_check_branch
    %38 = sbr.rel (0) target = $region45
  $region44: #{interaction_block.5} parent=0 // pred_region
    _
  $region45: #{interaction_block.5} parent=0 // pred_fallthru
    _
  // Predicated region
  $region46: #{interaction_block.5} parent=0 // pred_check
    _
  $region47: #{interaction_block.5} parent=0 // pred_check_branch
    %40 = sbr.rel (0) target = $region49
  $region48: #{interaction_block.5} parent=0 // pred_region
    _
  $region49: #{interaction_block.5} parent=0 // pred_fallthru
    _
  %v41 = vld [vmem:[%s0] sm:$0xff]
  %v42 = vld [vmem:[%s0 + $0x8] sm:$0xff]
  %v43 = vld [vmem:[%s0 + $0x10] sm:$0xff]
  %v44 = vld [vmem:[%s0 + $0x18] sm:$0xff]
  %v45 = vld [vmem:[%s3] sm:$0xff]
  %v46 = vld [vmem:[%s3 + $0x8] sm:$0xff]
  %vm47 = vcmask 130048
  %v49 = vsel %vm47, %v41, 0
  %v52 = vsel %vm47, %v42, 0
  %v55 = vsel %vm47, %v43, 0
  %v58 = vsel %vm47, %v44, 0
  %60 = vmatprep.subr.mxu0 0.0
  %61 = vmatpush1.msra.mxu0 %v45
  %62 = vmatprep.subr.mxu0 0.0
  %63 = vmatpush1.msra.mxu0 %v46
  %64 = vmatprep.subr.mxu0 0.0
  %65 = vmatpush1.msra.mxu0 0.0
  %66 = vmatprep.subr.mxu0 0.0
  %67 = vmatpush1.msra.mxu0 0.0
  %68 = vmatprep.subr.mxu0 0.0
  %69 = vmatpush1.msra.mxu0 0.0
  %70 = vmatprep.subr.mxu0 0.0
  %71 = vmatpush1.msra.mxu0 0.0
  %72 = vmatprep.subr.mxu0 0.0
  %73 = vmatpush1.msra.mxu0 0.0
  %74 = vmatprep.subr.mxu0 0.0
  %75 = vmatpush1.msra.mxu0 0.0
  %76 = vmatprep.subr.mxu0 0.0
  %77 = vmatpush1.msra.mxu0 0.0
  %78 = vmatprep.subr.mxu0 0.0
  %79 = vmatpush1.msra.mxu0 0.0
  %80 = vmatprep.subr.mxu0 0.0
  %81 = vmatpush1.msra.mxu0 0.0
  %82 = vmatprep.subr.mxu0 0.0
  %83 = vmatpush1.msra.mxu0 0.0
  %84 = vmatprep.subr.mxu0 0.0
  %85 = vmatpush1.msra.mxu0 0.0
  %86 = vmatprep.subr.mxu0 0.0
  %87 = vmatpush1.msra.mxu0 0.0
  %88 = vmatprep.subr.mxu0 0.0
  %89 = vmatpush1.msra.mxu0 0.0
  %90 = vmatprep.subr.mxu0 0.0
  %91 = vmatpush1.msra.mxu0 0.0
  %92 = vmatprep.subr.mxu0 0.0
  %93 = vmatpush1.msra.mxu0 0.0
  %94 = vmatprep.subr.mxu0 0.0
  %95 = vmatpush1.msra.mxu0 0.0
  %96 = vmatprep.subr.mxu0 0.0
  %97 = vmatpush1.msra.mxu0 0.0
  %98 = vmatprep.subr.mxu0 0.0
  %99 = vmatpush1.msra.mxu0 0.0
  %100 = vmatprep.subr.mxu0 0.0
  %101 = vmatpush1.msra.mxu0 0.0
  %102 = vmatprep.subr.mxu0 0.0
  %103 = vmatpush1.msra.mxu0 0.0
  %104 = vmatprep.subr.mxu0 0.0
  %105 = vmatpush1.msra.mxu0 0.0
  %106 = vmatprep.subr.mxu0 0.0
  %107 = vmatpush1.msra.mxu0 0.0
  %108 = vmatprep.subr.mxu0 0.0
  %109 = vmatpush1.msra.mxu0 0.0
  %110 = vmatprep.subr.mxu0 0.0
  %111 = vmatpush1.msra.mxu0 0.0
  %112 = vmatprep.subr.mxu0 0.0
  %113 = vmatpush1.msra.mxu0 0.0
  %114 = vmatprep.subr.mxu0 0.0
  %115 = vmatpush1.msra.mxu0 0.0
  %116 = vmatprep.subr.mxu0 0.0
  %117 = vmatpush1.msra.mxu0 0.0
  %118 = vmatprep.subr.mxu0 0.0
  %119 = vmatpush1.msra.mxu0 0.0
  %120 = vmatprep.subr.mxu0 0.0
  %121 = vmatpush1.msra.mxu0 0.0
  %122 = vmatprep.subr.mxu0 0.0
  %123 = vmatpush1.msra.mxu0 0.0
  %124 = vmatprep.mubr.f32.mxu0 0.0
  %125 = vmatmul.mubr.f32.gmra.mrb[0].mxu0 %v49
  %v126 = vpop.f32.mrb[0].mxu0
  %v127 = vadd.f32 0.0, %v126
  %v128 = vpop.f32.mrb[0].mxu0
  %129 = vmatprep.mubr.f32.mxu0 0.0
  %130 = vmatmul.mubr.f32.gmra.mrb[0].mxu0 %v52
  %v131 = vpop.f32.mrb[0].mxu0
  %v132 = vadd.f32 0.0, %v131
  %v133 = vpop.f32.mrb[0].mxu0
  %134 = vmatprep.mubr.f32.mxu0 0.0
  %135 = vmatmul.mubr.f32.gmra.mrb[0].mxu0 %v55
  %v136 = vpop.f32.mrb[0].mxu0
  %v137 = vadd.f32 0.0, %v136
  %v138 = vpop.f32.mrb[0].mxu0
  %139 = vmatprep.mubr.f32.mxu0 0.0
  %140 = vmatmul.mubr.f32.gmra.mrb[0].mxu0 %v58
  %v141 = vpop.f32.mrb[0].mxu0
  %v142 = vadd.f32 0.0, %v141
  %v143 = vpop.f32.mrb[0].mxu0
  %144 = vdwg.mxu0
  %v145 = vxor.u32 %v127, 2147483648
  %v146 = vxor.u32 %v132, 2147483648
  %v147 = vxor.u32 %v137, 2147483648
  %v148 = vxor.u32 %v142, 2147483648
  %v149 = vmul.f32 %v145, 1.442695
  %v150 = vpow.pop %v149
  %v151 = vmul.f32 %v146, 1.442695
  %v152 = vpow.pop %v151
  %v153 = vmul.f32 %v147, 1.442695
  %v154 = vpow.pop %v153
  %v155 = vmul.f32 %v148, 1.442695
  %v156 = vpow.pop %v155
  %v157 = vadd.f32 %v150, 1.0
  %v158 = vadd.f32 %v152, 1.0
  %v159 = vadd.f32 %v154, 1.0
  %v160 = vadd.f32 %v156, 1.0
  %v161 = vrcp.pop %v157
  %v162 = vmul.f32 1.0, %v161
  %v163 = vrcp.pop %v158
  %v164 = vmul.f32 1.0, %v163
  %v165 = vrcp.pop %v159
  %v166 = vmul.f32 1.0, %v165
  %v167 = vrcp.pop %v160
  %v168 = vmul.f32 1.0, %v167
  %v169 = vmul.f32 %v127, %v162
  %v170 = vmul.f32 %v132, %v164
  %v171 = vmul.f32 %v137, %v166
  %v172 = vmul.f32 %v142, %v168
  %v173 = vld [vmem:[%s1] sm:$0xff]
  %v174 = vld [vmem:[%s1 + $0x8] sm:$0xff]
  %v175 = vld [vmem:[%s1 + $0x10] sm:$0xff]
  %v176 = vld [vmem:[%s1 + $0x18] sm:$0xff]
  %v177 = vadd.f32 %v173, %v169
  %v178 = vadd.f32 %v174, %v170
  %v179 = vadd.f32 %v175, %v171
  %v180 = vadd.f32 %v176, %v172
  %v181 = vld [vmem:[%s4] sm:$0xff]
  %v182 = vld [vmem:[%s4 + $0x8] sm:$0xff]
  %v183 = vld [vmem:[%s4 + $0x10] sm:$0xff]
  %v184 = vld [vmem:[%s4 + $0x18] sm:$0xff]
  %v185 = vld [vmem:[%s5] sm:$0x1]
  %v186 = vld [vmem:[%s6] sm:$0xff]
  %v187 = vld [vmem:[%s6 + $0x8] sm:$0xff]
  %v188 = vld [vmem:[%s6 + $0x10] sm:$0xff]
  %v189 = vld [vmem:[%s6 + $0x18] sm:$0xff]
  %v190 = vld [vmem:[%s7] sm:$0x1]
  %v192 = vlaneseq
  %v193 = vshrl.u32 %v192, 7
  %v194 = vsub.s32 0, %v193
  %v195 = vrot.slane %v185, %v194
  %vm197 = vcmask 261120
  %v199 = vsel %vm197, %v177, 0
  %v202 = vsel %vm197, %v178, 0
  %v205 = vsel %vm197, %v179, 0
  %v208 = vsel %vm197, %v180, 0
  %210 = vmatprep.subr.mxu0 0.0
  %211 = vmatpush1.msra.mxu0 %v181
  %212 = vmatprep.subr.mxu0 0.0
  %213 = vmatpush1.msra.mxu0 %v182
  %214 = vmatprep.subr.mxu0 0.0
  %215 = vmatpush1.msra.mxu0 %v183
  %216 = vmatprep.subr.mxu0 0.0
  %217 = vmatpush1.msra.mxu0 %v184
  %218 = vmatprep.subr.mxu0 0.0
  %219 = vmatpush1.msra.mxu0 0.0
  %220 = vmatprep.subr.mxu0 0.0
  %221 = vmatpush1.msra.mxu0 0.0
  %222 = vmatprep.subr.mxu0 0.0
  %223 = vmatpush1.msra.mxu0 0.0
  %224 = vmatprep.subr.mxu0 0.0
  %225 = vmatpush1.msra.mxu0 0.0
  %226 = vmatprep.subr.mxu0 0.0
  %227 = vmatpush1.msra.mxu0 0.0
  %228 = vmatprep.subr.mxu0 0.0
  %229 = vmatpush1.msra.mxu0 0.0
  %230 = vmatprep.subr.mxu0 0.0
  %231 = vmatpush1.msra.mxu0 0.0
  %232 = vmatprep.subr.mxu0 0.0
  %233 = vmatpush1.msra.mxu0 0.0
  %234 = vmatprep.subr.mxu0 0.0
  %235 = vmatpush1.msra.mxu0 0.0
  %236 = vmatprep.subr.mxu0 0.0
  %237 = vmatpush1.msra.mxu0 0.0
  %238 = vmatprep.subr.mxu0 0.0
  %239 = vmatpush1.msra.mxu0 0.0
  %240 = vmatprep.subr.mxu0 0.0
  %241 = vmatpush1.msra.mxu0 0.0
  %242 = vmatprep.subr.mxu0 0.0
  %243 = vmatpush1.msra.mxu0 0.0
  %244 = vmatprep.subr.mxu0 0.0
  %245 = vmatpush1.msra.mxu0 0.0
  %246 = vmatprep.subr.mxu0 0.0
  %247 = vmatpush1.msra.mxu0 0.0
  %248 = vmatprep.subr.mxu0 0.0
  %249 = vmatpush1.msra.mxu0 0.0
  %250 = vmatprep.subr.mxu0 0.0
  %251 = vmatpush1.msra.mxu0 0.0
  %252 = vmatprep.subr.mxu0 0.0
  %253 = vmatpush1.msra.mxu0 0.0
  %254 = vmatprep.subr.mxu0 0.0
  %255 = vmatpush1.msra.mxu0 0.0
  %256 = vmatprep.subr.mxu0 0.0
  %257 = vmatpush1.msra.mxu0 0.0
  %258 = vmatprep.subr.mxu0 0.0
  %259 = vmatpush1.msra.mxu0 0.0
  %260 = vmatprep.subr.mxu0 0.0
  %261 = vmatpush1.msra.mxu0 0.0
  %262 = vmatprep.subr.mxu0 0.0
  %263 = vmatpush1.msra.mxu0 0.0
  %264 = vmatprep.subr.mxu0 0.0
  %265 = vmatpush1.msra.mxu0 0.0
  %266 = vmatprep.subr.mxu0 0.0
  %267 = vmatpush1.msra.mxu0 0.0
  %268 = vmatprep.subr.mxu0 0.0
  %269 = vmatpush1.msra.mxu0 0.0
  %270 = vmatprep.subr.mxu0 0.0
  %271 = vmatpush1.msra.mxu0 0.0
  %272 = vmatprep.subr.mxu0 0.0
  %273 = vmatpush1.msra.mxu0 0.0
  %274 = vmatprep.mubr.f32.mxu0 0.0
  %275 = vmatmul.mubr.f32.gmra.mrb[0].mxu0 %v199
  %v276 = vpop.f32.mrb[0].mxu0
  %v277 = vadd.f32 %v195, %v276
  %v278 = vpop.f32.mrb[0].mxu0
  %279 = vmatprep.mubr.f32.mxu0 0.0
  %280 = vmatmul.mubr.f32.gmra.mrb[0].mxu0 %v202
  %v281 = vpop.f32.mrb[0].mxu0
  %v282 = vadd.f32 %v195, %v281
  %v283 = vpop.f32.mrb[0].mxu0
  %284 = vmatprep.mubr.f32.mxu0 0.0
  %285 = vmatmul.mubr.f32.gmra.mrb[0].mxu0 %v205
  %v286 = vpop.f32.mrb[0].mxu0
  %v287 = vadd.f32 %v195, %v286
  %v288 = vpop.f32.mrb[0].mxu0
  %289 = vmatprep.mubr.f32.mxu0 0.0
  %290 = vmatmul.mubr.f32.gmra.mrb[0].mxu0 %v208
  %v291 = vpop.f32.mrb[0].mxu0
  %v292 = vadd.f32 %v195, %v291
  %v293 = vpop.f32.mrb[0].mxu0
  %294 = vdwg.mxu0
  %v295 = vxor.u32 %v277, 2147483648
  %v296 = vxor.u32 %v282, 2147483648
  %v297 = vxor.u32 %v287, 2147483648
  %v298 = vxor.u32 %v292, 2147483648
  %v299 = vmul.f32 %v295, 1.442695
  %v300 = vpow.pop %v299
  %v301 = vmul.f32 %v296, 1.442695
  %v302 = vpow.pop %v301
  %v303 = vmul.f32 %v297, 1.442695
  %v304 = vpow.pop %v303
  %v305 = vmul.f32 %v298, 1.442695
  %v306 = vpow.pop %v305
  %v307 = vadd.f32 %v300, 1.0
  %v308 = vadd.f32 %v302, 1.0
  %v309 = vadd.f32 %v304, 1.0
  %v310 = vadd.f32 %v306, 1.0
  %v311 = vrcp.pop %v307
  %v312 = vmul.f32 1.0, %v311
  %v313 = vrcp.pop %v308
  %v314 = vmul.f32 1.0, %v313
  %v315 = vrcp.pop %v309
  %v316 = vmul.f32 1.0, %v315
  %v317 = vrcp.pop %v310
  %v318 = vmul.f32 1.0, %v317
  %v319 = vmul.f32 %v277, %v312
  %v320 = vmul.f32 %v282, %v314
  %v321 = vmul.f32 %v287, %v316
  %v322 = vmul.f32 %v292, %v318
  %v324 = vlaneseq
  %v325 = vshrl.u32 %v324, 7
  %v326 = vsub.s32 0, %v325
  %v327 = vrot.slane %v190, %v326
  %v330 = vsel %vm197, %v319, 0
  %v333 = vsel %vm197, %v320, 0
  %v336 = vsel %vm197, %v321, 0
  %v339 = vsel %vm197, %v322, 0
  %341 = vmatprep.subr.mxu0 0.0
  %342 = vmatpush1.msra.mxu0 %v186
  %343 = vmatprep.subr.mxu0 0.0
  %344 = vmatpush1.msra.mxu0 %v187
  %345 = vmatprep.subr.mxu0 0.0
  %346 = vmatpush1.msra.mxu0 %v188
  %347 = vmatprep.subr.mxu0 0.0
  %348 = vmatpush1.msra.mxu0 %v189
  %349 = vmatprep.subr.mxu0 0.0
  %350 = vmatpush1.msra.mxu0 0.0
  %351 = vmatprep.subr.mxu0 0.0
  %352 = vmatpush1.msra.mxu0 0.0
  %353 = vmatprep.subr.mxu0 0.0
  %354 = vmatpush1.msra.mxu0 0.0
  %355 = vmatprep.subr.mxu0 0.0
  %356 = vmatpush1.msra.mxu0 0.0
  %357 = vmatprep.subr.mxu0 0.0
  %358 = vmatpush1.msra.mxu0 0.0
  %359 = vmatprep.subr.mxu0 0.0
  %360 = vmatpush1.msra.mxu0 0.0
  %361 = vmatprep.subr.mxu0 0.0
  %362 = vmatpush1.msra.mxu0 0.0
  %363 = vmatprep.subr.mxu0 0.0
  %364 = vmatpush1.msra.mxu0 0.0
  %365 = vmatprep.subr.mxu0 0.0
  %366 = vmatpush1.msra.mxu0 0.0
  %367 = vmatprep.subr.mxu0 0.0
  %368 = vmatpush1.msra.mxu0 0.0
  %369 = vmatprep.subr.mxu0 0.0
  %370 = vmatpush1.msra.mxu0 0.0
  %371 = vmatprep.subr.mxu0 0.0
  %372 = vmatpush1.msra.mxu0 0.0
  %373 = vmatprep.subr.mxu0 0.0
  %374 = vmatpush1.msra.mxu0 0.0
  %375 = vmatprep.subr.mxu0 0.0
  %376 = vmatpush1.msra.mxu0 0.0
  %377 = vmatprep.subr.mxu0 0.0
  %378 = vmatpush1.msra.mxu0 0.0
  %379 = vmatprep.subr.mxu0 0.0
  %380 = vmatpush1.msra.mxu0 0.0
  %381 = vmatprep.subr.mxu0 0.0
  %382 = vmatpush1.msra.mxu0 0.0
  %383 = vmatprep.subr.mxu0 0.0
  %384 = vmatpush1.msra.mxu0 0.0
  %385 = vmatprep.subr.mxu0 0.0
  %386 = vmatpush1.msra.mxu0 0.0
  %387 = vmatprep.subr.mxu0 0.0
  %388 = vmatpush1.msra.mxu0 0.0
  %389 = vmatprep.subr.mxu0 0.0
  %390 = vmatpush1.msra.mxu0 0.0
  %391 = vmatprep.subr.mxu0 0.0
  %392 = vmatpush1.msra.mxu0 0.0
  %393 = vmatprep.subr.mxu0 0.0
  %394 = vmatpush1.msra.mxu0 0.0
  %395 = vmatprep.subr.mxu0 0.0
  %396 = vmatpush1.msra.mxu0 0.0
  %397 = vmatprep.subr.mxu0 0.0
  %398 = vmatpush1.msra.mxu0 0.0
  %399 = vmatprep.subr.mxu0 0.0
  %400 = vmatpush1.msra.mxu0 0.0
  %401 = vmatprep.subr.mxu0 0.0
  %402 = vmatpush1.msra.mxu0 0.0
  %403 = vmatprep.subr.mxu0 0.0
  %404 = vmatpush1.msra.mxu0 0.0
  %405 = vmatprep.mubr.f32.mxu0 0.0
  %406 = vmatmul.mubr.f32.gmra.mrb[0].mxu0 %v330
  %v407 = vpop.f32.mrb[0].mxu0
  %v408 = vadd.f32 %v327, %v407
  %v409 = vpop.f32.mrb[0].mxu0
  %410 = vmatprep.mubr.f32.mxu0 0.0
  %411 = vmatmul.mubr.f32.gmra.mrb[0].mxu0 %v333
  %v412 = vpop.f32.mrb[0].mxu0
  %v413 = vadd.f32 %v327, %v412
  %v414 = vpop.f32.mrb[0].mxu0
  %415 = vmatprep.mubr.f32.mxu0 0.0
  %416 = vmatmul.mubr.f32.gmra.mrb[0].mxu0 %v336
  %v417 = vpop.f32.mrb[0].mxu0
  %v418 = vadd.f32 %v327, %v417
  %v419 = vpop.f32.mrb[0].mxu0
  %420 = vmatprep.mubr.f32.mxu0 0.0
  %421 = vmatmul.mubr.f32.gmra.mrb[0].mxu0 %v339
  %v422 = vpop.f32.mrb[0].mxu0
  %v423 = vadd.f32 %v327, %v422
  %v424 = vpop.f32.mrb[0].mxu0
  %425 = vdwg.mxu0
  %v426 = vxor.u32 %v408, 2147483648
  %v427 = vxor.u32 %v413, 2147483648
  %v428 = vxor.u32 %v418, 2147483648
  %v429 = vxor.u32 %v423, 2147483648
  %v430 = vmul.f32 %v426, 1.442695
  %v431 = vpow.pop %v430
  %v432 = vmul.f32 %v427, 1.442695
  %v433 = vpow.pop %v432
  %v434 = vmul.f32 %v428, 1.442695
  %v435 = vpow.pop %v434
  %v436 = vmul.f32 %v429, 1.442695
  %v437 = vpow.pop %v436
  %v438 = vadd.f32 %v431, 1.0
  %v439 = vadd.f32 %v433, 1.0
  %v440 = vadd.f32 %v435, 1.0
  %v441 = vadd.f32 %v437, 1.0
  %v442 = vrcp.pop %v438
  %v443 = vmul.f32 1.0, %v442
  %v444 = vrcp.pop %v439
  %v445 = vmul.f32 1.0, %v444
  %v446 = vrcp.pop %v440
  %v447 = vmul.f32 1.0, %v446
  %v448 = vrcp.pop %v441
  %v449 = vmul.f32 1.0, %v448
  %v450 = vmul.f32 %v408, %v443
  %v451 = vmul.f32 %v413, %v445
  %v452 = vmul.f32 %v418, %v447
  %v453 = vmul.f32 %v423, %v449
  %v454 = vadd.f32 %v177, %v450
  %v455 = vadd.f32 %v178, %v451
  %v456 = vadd.f32 %v179, %v452
  %v457 = vadd.f32 %v180, %v453
  %v458 = vld [vmem:[%s2] sm:$0xff]
  %v459 = vld [vmem:[%s2 + $0x8] sm:$0xff]
  %v460 = vld [vmem:[%s2 + $0x10] sm:$0xff]
  %v461 = vld [vmem:[%s2 + $0x18] sm:$0xff]
  %v462 = vadd.f32 %v454, %v458
  %v463 = vadd.f32 %v455, %v459
  %v464 = vadd.f32 %v456, %v460
  %v465 = vadd.f32 %v457, %v461
  %v466 = vld [vmem:[%s8] sm:$0xff]
  %v467 = vld [vmem:[%s8 + $0x8] sm:$0xff]
  %v468 = vld [vmem:[%s8 + $0x10] sm:$0xff]
  %v469 = vld [vmem:[%s8 + $0x18] sm:$0xff]
  %v470 = vld [vmem:[%s9] sm:$0x1]
  %v471 = vld [vmem:[%s10] sm:$0xff]
  %v472 = vld [vmem:[%s10 + $0x8] sm:$0xff]
  %v473 = vld [vmem:[%s10 + $0x10] sm:$0xff]
  %v474 = vld [vmem:[%s10 + $0x18] sm:$0xff]
  %v475 = vld [vmem:[%s11] sm:$0x1]
  %v477 = vlaneseq
  %v478 = vshrl.u32 %v477, 7
  %v479 = vsub.s32 0, %v478
  %v480 = vrot.slane %v470, %v479
  %v483 = vsel %vm197, %v462, 0
  %v486 = vsel %vm197, %v463, 0
  %v489 = vsel %vm197, %v464, 0
  %v492 = vsel %vm197, %v465, 0
  %494 = vmatprep.subr.mxu0 0.0
  %495 = vmatpush1.msra.mxu0 %v466
  %496 = vmatprep.subr.mxu0 0.0
  %497 = vmatpush1.msra.mxu0 %v467
  %498 = vmatprep.subr.mxu0 0.0
  %499 = vmatpush1.msra.mxu0 %v468
  %500 = vmatprep.subr.mxu0 0.0
  %501 = vmatpush1.msra.mxu0 %v469
  %502 = vmatprep.subr.mxu0 0.0
  %503 = vmatpush1.msra.mxu0 0.0
  %504 = vmatprep.subr.mxu0 0.0
  %505 = vmatpush1.msra.mxu0 0.0
  %506 = vmatprep.subr.mxu0 0.0
  %507 = vmatpush1.msra.mxu0 0.0
  %508 = vmatprep.subr.mxu0 0.0
  %509 = vmatpush1.msra.mxu0 0.0
  %510 = vmatprep.subr.mxu0 0.0
  %511 = vmatpush1.msra.mxu0 0.0
  %512 = vmatprep.subr.mxu0 0.0
  %513 = vmatpush1.msra.mxu0 0.0
  %514 = vmatprep.subr.mxu0 0.0
  %515 = vmatpush1.msra.mxu0 0.0
  %516 = vmatprep.subr.mxu0 0.0
  %517 = vmatpush1.msra.mxu0 0.0
  %518 = vmatprep.subr.mxu0 0.0
  %519 = vmatpush1.msra.mxu0 0.0
  %520 = vmatprep.subr.mxu0 0.0
  %521 = vmatpush1.msra.mxu0 0.0
  %522 = vmatprep.subr.mxu0 0.0
  %523 = vmatpush1.msra.mxu0 0.0
  %524 = vmatprep.subr.mxu0 0.0
  %525 = vmatpush1.msra.mxu0 0.0
  %526 = vmatprep.subr.mxu0 0.0
  %527 = vmatpush1.msra.mxu0 0.0
  %528 = vmatprep.subr.mxu0 0.0
  %529 = vmatpush1.msra.mxu0 0.0
  %530 = vmatprep.subr.mxu0 0.0
  %531 = vmatpush1.msra.mxu0 0.0
  %532 = vmatprep.subr.mxu0 0.0
  %533 = vmatpush1.msra.mxu0 0.0
  %534 = vmatprep.subr.mxu0 0.0
  %535 = vmatpush1.msra.mxu0 0.0
  %536 = vmatprep.subr.mxu0 0.0
  %537 = vmatpush1.msra.mxu0 0.0
  %538 = vmatprep.subr.mxu0 0.0
  %539 = vmatpush1.msra.mxu0 0.0
  %540 = vmatprep.subr.mxu0 0.0
  %541 = vmatpush1.msra.mxu0 0.0
  %542 = vmatprep.subr.mxu0 0.0
  %543 = vmatpush1.msra.mxu0 0.0
  %544 = vmatprep.subr.mxu0 0.0
  %545 = vmatpush1.msra.mxu0 0.0
  %546 = vmatprep.subr.mxu0 0.0
  %547 = vmatpush1.msra.mxu0 0.0
  %548 = vmatprep.subr.mxu0 0.0
  %549 = vmatpush1.msra.mxu0 0.0
  %550 = vmatprep.subr.mxu0 0.0
  %551 = vmatpush1.msra.mxu0 0.0
  %552 = vmatprep.subr.mxu0 0.0
  %553 = vmatpush1.msra.mxu0 0.0
  %554 = vmatprep.subr.mxu0 0.0
  %555 = vmatpush1.msra.mxu0 0.0
  %556 = vmatprep.subr.mxu0 0.0
  %557 = vmatpush1.msra.mxu0 0.0
  %558 = vmatprep.mubr.f32.mxu0 0.0
  %559 = vmatmul.mubr.f32.gmra.mrb[0].mxu0 %v483
  %v560 = vpop.f32.mrb[0].mxu0
  %v561 = vadd.f32 %v480, %v560
  %v562 = vpop.f32.mrb[0].mxu0
  %563 = vmatprep.mubr.f32.mxu0 0.0
  %564 = vmatmul.mubr.f32.gmra.mrb[0].mxu0 %v486
  %v565 = vpop.f32.mrb[0].mxu0
  %v566 = vadd.f32 %v480, %v565
  %v567 = vpop.f32.mrb[0].mxu0
  %568 = vmatprep.mubr.f32.mxu0 0.0
  %569 = vmatmul.mubr.f32.gmra.mrb[0].mxu0 %v489
  %v570 = vpop.f32.mrb[0].mxu0
  %v571 = vadd.f32 %v480, %v570
  %v572 = vpop.f32.mrb[0].mxu0
  %573 = vmatprep.mubr.f32.mxu0 0.0
  %574 = vmatmul.mubr.f32.gmra.mrb[0].mxu0 %v492
  %v575 = vpop.f32.mrb[0].mxu0
  %v576 = vadd.f32 %v480, %v575
  %v577 = vpop.f32.mrb[0].mxu0
  %578 = vdwg.mxu0
  %v579 = vxor.u32 %v561, 2147483648
  %v580 = vxor.u32 %v566, 2147483648
  %v581 = vxor.u32 %v571, 2147483648
  %v582 = vxor.u32 %v576, 2147483648
  %v583 = vmul.f32 %v579, 1.442695
  %v584 = vpow.pop %v583
  %v585 = vmul.f32 %v580, 1.442695
  %v586 = vpow.pop %v585
  %v587 = vmul.f32 %v581, 1.442695
  %v588 = vpow.pop %v587
  %v589 = vmul.f32 %v582, 1.442695
  %v590 = vpow.pop %v589
  %v591 = vadd.f32 %v584, 1.0
  %v592 = vadd.f32 %v586, 1.0
  %v593 = vadd.f32 %v588, 1.0
  %v594 = vadd.f32 %v590, 1.0
  %v595 = vrcp.pop %v591
  %v596 = vmul.f32 1.0, %v595
  %v597 = vrcp.pop %v592
  %v598 = vmul.f32 1.0, %v597
  %v599 = vrcp.pop %v593
  %v600 = vmul.f32 1.0, %v599
  %v601 = vrcp.pop %v594
  %v602 = vmul.f32 1.0, %v601
  %v603 = vmul.f32 %v561, %v596
  %v604 = vmul.f32 %v566, %v598
  %v605 = vmul.f32 %v571, %v600
  %v606 = vmul.f32 %v576, %v602
  %v608 = vlaneseq
  %v609 = vshrl.u32 %v608, 7
  %v610 = vsub.s32 0, %v609
  %v611 = vrot.slane %v475, %v610
  %v614 = vsel %vm197, %v603, 0
  %v617 = vsel %vm197, %v604, 0
  %v620 = vsel %vm197, %v605, 0
  %v623 = vsel %vm197, %v606, 0
  %625 = vmatprep.subr.mxu0 0.0
  %626 = vmatpush1.msra.mxu0 %v471
  %627 = vmatprep.subr.mxu0 0.0
  %628 = vmatpush1.msra.mxu0 %v472
  %629 = vmatprep.subr.mxu0 0.0
  %630 = vmatpush1.msra.mxu0 %v473
  %631 = vmatprep.subr.mxu0 0.0
  %632 = vmatpush1.msra.mxu0 %v474
  %633 = vmatprep.subr.mxu0 0.0
  %634 = vmatpush1.msra.mxu0 0.0
  %635 = vmatprep.subr.mxu0 0.0
  %636 = vmatpush1.msra.mxu0 0.0
  %637 = vmatprep.subr.mxu0 0.0
  %638 = vmatpush1.msra.mxu0 0.0
  %639 = vmatprep.subr.mxu0 0.0
  %640 = vmatpush1.msra.mxu0 0.0
  %641 = vmatprep.subr.mxu0 0.0
  %642 = vmatpush1.msra.mxu0 0.0
  %643 = vmatprep.subr.mxu0 0.0
  %644 = vmatpush1.msra.mxu0 0.0
  %645 = vmatprep.subr.mxu0 0.0
  %646 = vmatpush1.msra.mxu0 0.0
  %647 = vmatprep.subr.mxu0 0.0
  %648 = vmatpush1.msra.mxu0 0.0
  %649 = vmatprep.subr.mxu0 0.0
  %650 = vmatpush1.msra.mxu0 0.0
  %651 = vmatprep.subr.mxu0 0.0
  %652 = vmatpush1.msra.mxu0 0.0
  %653 = vmatprep.subr.mxu0 0.0
  %654 = vmatpush1.msra.mxu0 0.0
  %655 = vmatprep.subr.mxu0 0.0
  %656 = vmatpush1.msra.mxu0 0.0
  %657 = vmatprep.subr.mxu0 0.0
  %658 = vmatpush1.msra.mxu0 0.0
  %659 = vmatprep.subr.mxu0 0.0
  %660 = vmatpush1.msra.mxu0 0.0
  %661 = vmatprep.subr.mxu0 0.0
  %662 = vmatpush1.msra.mxu0 0.0
  %663 = vmatprep.subr.mxu0 0.0
  %664 = vmatpush1.msra.mxu0 0.0
  %665 = vmatprep.subr.mxu0 0.0
  %666 = vmatpush1.msra.mxu0 0.0
  %667 = vmatprep.subr.mxu0 0.0
  %668 = vmatpush1.msra.mxu0 0.0
  %669 = vmatprep.subr.mxu0 0.0
  %670 = vmatpush1.msra.mxu0 0.0
  %671 = vmatprep.subr.mxu0 0.0
  %672 = vmatpush1.msra.mxu0 0.0
  %673 = vmatprep.subr.mxu0 0.0
  %674 = vmatpush1.msra.mxu0 0.0
  %675 = vmatprep.subr.mxu0 0.0
  %676 = vmatpush1.msra.mxu0 0.0
  %677 = vmatprep.subr.mxu0 0.0
  %678 = vmatpush1.msra.mxu0 0.0
  %679 = vmatprep.subr.mxu0 0.0
  %680 = vmatpush1.msra.mxu0 0.0
  %681 = vmatprep.subr.mxu0 0.0
  %682 = vmatpush1.msra.mxu0 0.0
  %683 = vmatprep.subr.mxu0 0.0
  %684 = vmatpush1.msra.mxu0 0.0
  %685 = vmatprep.subr.mxu0 0.0
  %686 = vmatpush1.msra.mxu0 0.0
  %687 = vmatprep.subr.mxu0 0.0
  %688 = vmatpush1.msra.mxu0 0.0
  %689 = vmatprep.mubr.f32.mxu0 0.0
  %690 = vmatmul.mubr.f32.gmra.mrb[0].mxu0 %v614
  %v691 = vpop.f32.mrb[0].mxu0
  %v692 = vadd.f32 %v611, %v691
  %v693 = vpop.f32.mrb[0].mxu0
  %694 = vmatprep.mubr.f32.mxu0 0.0
  %695 = vmatmul.mubr.f32.gmra.mrb[0].mxu0 %v617
  %v696 = vpop.f32.mrb[0].mxu0
  %v697 = vadd.f32 %v611, %v696
  %v698 = vpop.f32.mrb[0].mxu0
  %699 = vmatprep.mubr.f32.mxu0 0.0
  %700 = vmatmul.mubr.f32.gmra.mrb[0].mxu0 %v620
  %v701 = vpop.f32.mrb[0].mxu0
  %v702 = vadd.f32 %v611, %v701
  %v703 = vpop.f32.mrb[0].mxu0
  %704 = vmatprep.mubr.f32.mxu0 0.0
  %705 = vmatmul.mubr.f32.gmra.mrb[0].mxu0 %v623
  %v706 = vpop.f32.mrb[0].mxu0
  %v707 = vadd.f32 %v611, %v706
  %v708 = vpop.f32.mrb[0].mxu0
  %709 = vdwg.mxu0
  %v710 = vxor.u32 %v692, 2147483648
  %v711 = vxor.u32 %v697, 2147483648
  %v712 = vxor.u32 %v702, 2147483648
  %v713 = vxor.u32 %v707, 2147483648
  %v714 = vmul.f32 %v710, 1.442695
  %v715 = vpow.pop %v714
  %v716 = vmul.f32 %v711, 1.442695
  %v717 = vpow.pop %v716
  %v718 = vmul.f32 %v712, 1.442695
  %v719 = vpow.pop %v718
  %v720 = vmul.f32 %v713, 1.442695
  %v721 = vpow.pop %v720
  %v722 = vadd.f32 %v715, 1.0
  %v723 = vadd.f32 %v717, 1.0
  %v724 = vadd.f32 %v719, 1.0
  %v725 = vadd.f32 %v721, 1.0
  %v726 = vrcp.pop %v722
  %v727 = vmul.f32 1.0, %v726
  %v728 = vrcp.pop %v723
  %v729 = vmul.f32 1.0, %v728
  %v730 = vrcp.pop %v724
  %v731 = vmul.f32 1.0, %v730
  %v732 = vrcp.pop %v725
  %v733 = vmul.f32 1.0, %v732
  %v734 = vmul.f32 %v692, %v727
  %v735 = vmul.f32 %v697, %v729
  %v736 = vmul.f32 %v702, %v731
  %v737 = vmul.f32 %v707, %v733
  %v738 = vadd.f32 %v462, %v734
  %v739 = vadd.f32 %v463, %v735
  %v740 = vadd.f32 %v464, %v736
  %v741 = vadd.f32 %v465, %v737
  %s742 = scalar_lea.vmem %s8, 32
  %v743 = vld [vmem:[%s742] sm:$0xff]
  %v744 = vld [vmem:[%s742 + $0x8] sm:$0xff]
  %v745 = vld [vmem:[%s742 + $0x10] sm:$0xff]
  %v746 = vld [vmem:[%s742 + $0x18] sm:$0xff]
  %s747 = scalar_lea.vmem %s9, 1
  %v748 = vld [vmem:[%s747] sm:$0x1]
  %s749 = scalar_lea.vmem %s10, 32
  %v750 = vld [vmem:[%s749] sm:$0xff]
  %v751 = vld [vmem:[%s749 + $0x8] sm:$0xff]
  %v752 = vld [vmem:[%s749 + $0x10] sm:$0xff]
  %v753 = vld [vmem:[%s749 + $0x18] sm:$0xff]
  %s754 = scalar_lea.vmem %s11, 1
  %v755 = vld [vmem:[%s754] sm:$0x1]
  %v757 = vlaneseq
  %v758 = vshrl.u32 %v757, 7
  %v759 = vsub.s32 0, %v758
  %v760 = vrot.slane %v748, %v759
  %v763 = vsel %vm197, %v738, 0
  %v766 = vsel %vm197, %v739, 0
  %v769 = vsel %vm197, %v740, 0
  %v772 = vsel %vm197, %v741, 0
  %774 = vmatprep.subr.mxu0 0.0
  %775 = vmatpush1.msra.mxu0 %v743
  %776 = vmatprep.subr.mxu0 0.0
  %777 = vmatpush1.msra.mxu0 %v744
  %778 = vmatprep.subr.mxu0 0.0
  %779 = vmatpush1.msra.mxu0 %v745
  %780 = vmatprep.subr.mxu0 0.0
  %781 = vmatpush1.msra.mxu0 %v746
  %782 = vmatprep.subr.mxu0 0.0
  %783 = vmatpush1.msra.mxu0 0.0
  %784 = vmatprep.subr.mxu0 0.0
  %785 = vmatpush1.msra.mxu0 0.0
  %786 = vmatprep.subr.mxu0 0.0
  %787 = vmatpush1.msra.mxu0 0.0
  %788 = vmatprep.subr.mxu0 0.0
  %789 = vmatpush1.msra.mxu0 0.0
  %790 = vmatprep.subr.mxu0 0.0
  %791 = vmatpush1.msra.mxu0 0.0
  %792 = vmatprep.subr.mxu0 0.0
  %793 = vmatpush1.msra.mxu0 0.0
  %794 = vmatprep.subr.mxu0 0.0
  %795 = vmatpush1.msra.mxu0 0.0
  %796 = vmatprep.subr.mxu0 0.0
  %797 = vmatpush1.msra.mxu0 0.0
  %798 = vmatprep.subr.mxu0 0.0
  %799 = vmatpush1.msra.mxu0 0.0
  %800 = vmatprep.subr.mxu0 0.0
  %801 = vmatpush1.msra.mxu0 0.0
  %802 = vmatprep.subr.mxu0 0.0
  %803 = vmatpush1.msra.mxu0 0.0
  %804 = vmatprep.subr.mxu0 0.0
  %805 = vmatpush1.msra.mxu0 0.0
  %806 = vmatprep.subr.mxu0 0.0
  %807 = vmatpush1.msra.mxu0 0.0
  %808 = vmatprep.subr.mxu0 0.0
  %809 = vmatpush1.msra.mxu0 0.0
  %810 = vmatprep.subr.mxu0 0.0
  %811 = vmatpush1.msra.mxu0 0.0
  %812 = vmatprep.subr.mxu0 0.0
  %813 = vmatpush1.msra.mxu0 0.0
  %814 = vmatprep.subr.mxu0 0.0
  %815 = vmatpush1.msra.mxu0 0.0
  %816 = vmatprep.subr.mxu0 0.0
  %817 = vmatpush1.msra.mxu0 0.0
  %818 = vmatprep.subr.mxu0 0.0
  %819 = vmatpush1.msra.mxu0 0.0
  %820 = vmatprep.subr.mxu0 0.0
  %821 = vmatpush1.msra.mxu0 0.0
  %822 = vmatprep.subr.mxu0 0.0
  %823 = vmatpush1.msra.mxu0 0.0
  %824 = vmatprep.subr.mxu0 0.0
  %825 = vmatpush1.msra.mxu0 0.0
  %826 = vmatprep.subr.mxu0 0.0
  %827 = vmatpush1.msra.mxu0 0.0
  %828 = vmatprep.subr.mxu0 0.0
  %829 = vmatpush1.msra.mxu0 0.0
  %830 = vmatprep.subr.mxu0 0.0
  %831 = vmatpush1.msra.mxu0 0.0
  %832 = vmatprep.subr.mxu0 0.0
  %833 = vmatpush1.msra.mxu0 0.0
  %834 = vmatprep.subr.mxu0 0.0
  %835 = vmatpush1.msra.mxu0 0.0
  %836 = vmatprep.subr.mxu0 0.0
  %837 = vmatpush1.msra.mxu0 0.0
  %838 = vmatprep.mubr.f32.mxu0 0.0
  %839 = vmatmul.mubr.f32.gmra.mrb[0].mxu0 %v763
  %v840 = vpop.f32.mrb[0].mxu0
  %v841 = vadd.f32 %v760, %v840
  %v842 = vpop.f32.mrb[0].mxu0
  %843 = vmatprep.mubr.f32.mxu0 0.0
  %844 = vmatmul.mubr.f32.gmra.mrb[0].mxu0 %v766
  %v845 = vpop.f32.mrb[0].mxu0
  %v846 = vadd.f32 %v760, %v845
  %v847 = vpop.f32.mrb[0].mxu0
  %848 = vmatprep.mubr.f32.mxu0 0.0
  %849 = vmatmul.mubr.f32.gmra.mrb[0].mxu0 %v769
  %v850 = vpop.f32.mrb[0].mxu0
  %v851 = vadd.f32 %v760, %v850
  %v852 = vpop.f32.mrb[0].mxu0
  %853 = vmatprep.mubr.f32.mxu0 0.0
  %854 = vmatmul.mubr.f32.gmra.mrb[0].mxu0 %v772
  %v855 = vpop.f32.mrb[0].mxu0
  %v856 = vadd.f32 %v760, %v855
  %v857 = vpop.f32.mrb[0].mxu0
  %858 = vdwg.mxu0
  %v859 = vxor.u32 %v841, 2147483648
  %v860 = vxor.u32 %v846, 2147483648
  %v861 = vxor.u32 %v851, 2147483648
  %v862 = vxor.u32 %v856, 2147483648
  %v863 = vmul.f32 %v859, 1.442695
  %v864 = vpow.pop %v863
  %v865 = vmul.f32 %v860, 1.442695
  %v866 = vpow.pop %v865
  %v867 = vmul.f32 %v861, 1.442695
  %v868 = vpow.pop %v867
  %v869 = vmul.f32 %v862, 1.442695
  %v870 = vpow.pop %v869
  %v871 = vadd.f32 %v864, 1.0
  %v872 = vadd.f32 %v866, 1.0
  %v873 = vadd.f32 %v868, 1.0
  %v874 = vadd.f32 %v870, 1.0
  %v875 = vrcp.pop %v871
  %v876 = vmul.f32 1.0, %v875
  %v877 = vrcp.pop %v872
  %v878 = vmul.f32 1.0, %v877
  %v879 = vrcp.pop %v873
  %v880 = vmul.f32 1.0, %v879
  %v881 = vrcp.pop %v874
  %v882 = vmul.f32 1.0, %v881
  %v883 = vmul.f32 %v841, %v876
  %v884 = vmul.f32 %v846, %v878
  %v885 = vmul.f32 %v851, %v880
  %v886 = vmul.f32 %v856, %v882
  %v888 = vlaneseq
  %v889 = vshrl.u32 %v888, 7
  %v890 = vsub.s32 0, %v889
  %v891 = vrot.slane %v755, %v890
  %v894 = vsel %vm197, %v883, 0
  %v897 = vsel %vm197, %v884, 0
  %v900 = vsel %vm197, %v885, 0
  %v903 = vsel %vm197, %v886, 0
  %905 = vmatprep.subr.mxu0 0.0
  %906 = vmatpush1.msra.mxu0 %v750
  %907 = vmatprep.subr.mxu0 0.0
  %908 = vmatpush1.msra.mxu0 %v751
  %909 = vmatprep.subr.mxu0 0.0
  %910 = vmatpush1.msra.mxu0 %v752
  %911 = vmatprep.subr.mxu0 0.0
  %912 = vmatpush1.msra.mxu0 %v753
  %913 = vmatprep.subr.mxu0 0.0
  %914 = vmatpush1.msra.mxu0 0.0
  %915 = vmatprep.subr.mxu0 0.0
  %916 = vmatpush1.msra.mxu0 0.0
  %917 = vmatprep.subr.mxu0 0.0
  %918 = vmatpush1.msra.mxu0 0.0
  %919 = vmatprep.subr.mxu0 0.0
  %920 = vmatpush1.msra.mxu0 0.0
  %921 = vmatprep.subr.mxu0 0.0
  %922 = vmatpush1.msra.mxu0 0.0
  %923 = vmatprep.subr.mxu0 0.0
  %924 = vmatpush1.msra.mxu0 0.0
  %925 = vmatprep.subr.mxu0 0.0
  %926 = vmatpush1.msra.mxu0 0.0
  %927 = vmatprep.subr.mxu0 0.0
  %928 = vmatpush1.msra.mxu0 0.0
  %929 = vmatprep.subr.mxu0 0.0
  %930 = vmatpush1.msra.mxu0 0.0
  %931 = vmatprep.subr.mxu0 0.0
  %932 = vmatpush1.msra.mxu0 0.0
  %933 = vmatprep.subr.mxu0 0.0
  %934 = vmatpush1.msra.mxu0 0.0
  %935 = vmatprep.subr.mxu0 0.0
  %936 = vmatpush1.msra.mxu0 0.0
  %937 = vmatprep.subr.mxu0 0.0
  %938 = vmatpush1.msra.mxu0 0.0
  %939 = vmatprep.subr.mxu0 0.0
  %940 = vmatpush1.msra.mxu0 0.0
  %941 = vmatprep.subr.mxu0 0.0
  %942 = vmatpush1.msra.mxu0 0.0
  %943 = vmatprep.subr.mxu0 0.0
  %944 = vmatpush1.msra.mxu0 0.0
  %945 = vmatprep.subr.mxu0 0.0
  %946 = vmatpush1.msra.mxu0 0.0
  %947 = vmatprep.subr.mxu0 0.0
  %948 = vmatpush1.msra.mxu0 0.0
  %949 = vmatprep.subr.mxu0 0.0
  %950 = vmatpush1.msra.mxu0 0.0
  %951 = vmatprep.subr.mxu0 0.0
  %952 = vmatpush1.msra.mxu0 0.0
  %953 = vmatprep.subr.mxu0 0.0
  %954 = vmatpush1.msra.mxu0 0.0
  %955 = vmatprep.subr.mxu0 0.0
  %956 = vmatpush1.msra.mxu0 0.0
  %957 = vmatprep.subr.mxu0 0.0
  %958 = vmatpush1.msra.mxu0 0.0
  %959 = vmatprep.subr.mxu0 0.0
  %960 = vmatpush1.msra.mxu0 0.0
  %961 = vmatprep.subr.mxu0 0.0
  %962 = vmatpush1.msra.mxu0 0.0
  %963 = vmatprep.subr.mxu0 0.0
  %964 = vmatpush1.msra.mxu0 0.0
  %965 = vmatprep.subr.mxu0 0.0
  %966 = vmatpush1.msra.mxu0 0.0
  %967 = vmatprep.subr.mxu0 0.0
  %968 = vmatpush1.msra.mxu0 0.0
  %969 = vmatprep.mubr.f32.mxu0 0.0
  %970 = vmatmul.mubr.f32.gmra.mrb[0].mxu0 %v894
  %v971 = vpop.f32.mrb[0].mxu0
  %v972 = vadd.f32 %v891, %v971
  %v973 = vpop.f32.mrb[0].mxu0
  %974 = vmatprep.mubr.f32.mxu0 0.0
  %975 = vmatmul.mubr.f32.gmra.mrb[0].mxu0 %v897
  %v976 = vpop.f32.mrb[0].mxu0
  %v977 = vadd.f32 %v891, %v976
  %v978 = vpop.f32.mrb[0].mxu0
  %979 = vmatprep.mubr.f32.mxu0 0.0
  %980 = vmatmul.mubr.f32.gmra.mrb[0].mxu0 %v900
  %v981 = vpop.f32.mrb[0].mxu0
  %v982 = vadd.f32 %v891, %v981
  %v983 = vpop.f32.mrb[0].mxu0
  %984 = vmatprep.mubr.f32.mxu0 0.0
  %985 = vmatmul.mubr.f32.gmra.mrb[0].mxu0 %v903
  %v986 = vpop.f32.mrb[0].mxu0
  %v987 = vadd.f32 %v891, %v986
  %v988 = vpop.f32.mrb[0].mxu0
  %989 = vdwg.mxu0
  %v990 = vxor.u32 %v972, 2147483648
  %v991 = vxor.u32 %v977, 2147483648
  %v992 = vxor.u32 %v982, 2147483648
  %v993 = vxor.u32 %v987, 2147483648
  %v994 = vmul.f32 %v990, 1.442695
  %v995 = vpow.pop %v994
  %v996 = vmul.f32 %v991, 1.442695
  %v997 = vpow.pop %v996
  %v998 = vmul.f32 %v992, 1.442695
  %v999 = vpow.pop %v998
  %v1000 = vmul.f32 %v993, 1.442695
  %v1001 = vpow.pop %v1000
  %v1002 = vadd.f32 %v995, 1.0
  %v1003 = vadd.f32 %v997, 1.0
  %v1004 = vadd.f32 %v999, 1.0
  %v1005 = vadd.f32 %v1001, 1.0
  %v1006 = vrcp.pop %v1002
  %v1007 = vmul.f32 1.0, %v1006
  %v1008 = vrcp.pop %v1003
  %v1009 = vmul.f32 1.0, %v1008
  %v1010 = vrcp.pop %v1004
  %v1011 = vmul.f32 1.0, %v1010
  %v1012 = vrcp.pop %v1005
  %v1013 = vmul.f32 1.0, %v1012
  %v1014 = vmul.f32 %v972, %v1007
  %v1015 = vmul.f32 %v977, %v1009
  %v1016 = vmul.f32 %v982, %v1011
  %v1017 = vmul.f32 %v987, %v1013
  %v1018 = vadd.f32 %v738, %v1014
  %v1019 = vadd.f32 %v739, %v1015
  %v1020 = vadd.f32 %v740, %v1016
  %v1021 = vadd.f32 %v741, %v1017
  %1022 = vst.msk [vmem:[%s12] sm:$0xff] %vm197, %v1018
  %1023 = vst.msk [vmem:[%s12 + $0x8] sm:$0xff] %vm197, %v1019
  %1024 = vst.msk [vmem:[%s12 + $0x10] sm:$0xff] %vm197, %v1020
  %1025 = vst.msk [vmem:[%s12 + $0x18] sm:$0xff] %vm197, %v1021
  // Predicated region
  $region50: #{interaction_block.5} parent=0 // pred_check
    _
  $region51: #{interaction_block.5} parent=0 // pred_check_branch
    %1027 = sbr.rel (0) target = $region53
  $region52: #{interaction_block.5} parent=0 // pred_region
    _
  $region53: #{interaction_block.5} parent=0 // pred_fallthru
    _
  // Predicated region
  $region54: #{interaction_block.5} parent=0 // pred_check
    _
  $region55: #{interaction_block.5} parent=0 // pred_check_branch
    %1029 = sbr.rel (0) target = $region57
  $region56: #{interaction_block.5} parent=0 // pred_region
    _
  $region57: #{interaction_block.5} parent=0 // pred_fallthru
    _

</llo_original>
